<compile_context>
chip_gen: v7x
topology: tpu7x:2x2x1
jax: 0.10.0
libtpu: 0.0.40
codegen_flags: <defaults>
</compile_context>

<pallas_src>
import functools

import jax
import jax.numpy as jnp
import numpy as np
from jax.experimental import pallas as pl
from jax.experimental.pallas import tpu as pltpu


def _round_up(x, m):
    return ((x + m - 1) // m) * m


def _layout(latents, actions, hiddens, gaussians):
    A, L, H, G = actions, latents, hiddens, gaussians
    gl = G * L
    xl_pad = _round_up(A + L, 128)          # [action|latent] segment of xh
    h_pad = _round_up(H, 128)               # h segment of xh / state width
    seg_m = _round_up(gl, 128)              # means segment
    seg_s = _round_up(gl, 128)              # sigmas segment
    seg_p = _round_up(G, 128)               # pi segment
    seg_d = 128                             # d segment
    off_m = 0
    off_s = off_m + seg_m
    off_p = off_s + seg_s
    off_d = off_p + seg_p
    return dict(A=A, L=L, H=H, G=G, GL=gl,
                XL_PAD=xl_pad, H_PAD=h_pad, K_PAD=xl_pad + h_pad,
                SEG_M=seg_m, SEG_S=seg_s, SEG_P=seg_p, SEG_D=seg_d,
                OFF_M=off_m, OFF_S=off_s, OFF_P=off_p, OFF_D=off_d,
                OUT_PAD=off_d + seg_d)


def init_params(key, latents, actions, hiddens, gaussians):
    """Deterministic PyTorch-style uniform init for LSTMCell + gmm Linear."""
    in_dim = latents + actions
    out_dim = (2 * latents + 1) * gaussians + 1
    k = 1.0 / jnp.sqrt(jnp.float32(hiddens))
    ks = jax.random.split(key, 6)
    u = lambda kk, shape, bound: jax.random.uniform(
        kk, shape, jnp.float32, -bound, bound)
    return {
        "w_ih": u(ks[0], (4 * hiddens, in_dim), k),
        "w_hh": u(ks[1], (4 * hiddens, hiddens), k),
        "b_ih": u(ks[2], (4 * hiddens,), k),
        "b_hh": u(ks[3], (4 * hiddens,), k),
        "w_gmm": u(ks[4], (out_dim, hiddens), k),
        "b_gmm": u(ks[5], (out_dim,), k),
    }


def prepare_params(params, *, latents, actions, hiddens, gaussians,
                   compute_dtype=jnp.float32):
    """One-time packing: transpose, split, lane-pad, and stack all weights."""
    ly = _layout(latents, actions, hiddens, gaussians)
    A, L, H, G, GL = ly["A"], ly["L"], ly["H"], ly["G"], ly["GL"]
    f32 = jnp.float32

    w_ih_t = jnp.transpose(params["w_ih"]).astype(f32)      # (A+L, 4H)
    w_hh_t = jnp.transpose(params["w_hh"]).astype(f32)      # (H,   4H)
    b_lstm = (params["b_ih"] + params["b_hh"]).astype(f32)  # (4H,)
    w_gmm_t = jnp.transpose(params["w_gmm"]).astype(f32)    # (H, out_dim)
    b_gmm = params["b_gmm"].astype(f32)                     # (out_dim,)

    # Fused, lane-aligned gate weight: rows [0,A+L) = x-weights, rows
    # [XL_PAD, XL_PAD+H) = h-weights; gate k lives in columns [k*H_PAD, k*H_PAD+H).
    w_gates = jnp.zeros((ly["K_PAD"], 4 * ly["H_PAD"]), f32)
    b_gates = jnp.zeros((1, 4 * ly["H_PAD"]), f32)
    for k in range(4):
        col = k * ly["H_PAD"]
        w_gates = w_gates.at[0:A + L, col:col + H].set(
            w_ih_t[:, k * H:(k + 1) * H])
        w_gates = w_gates.at[ly["XL_PAD"]:ly["XL_PAD"] + H, col:col + H].set(
            w_hh_t[:, k * H:(k + 1) * H])
        b_gates = b_gates.at[0, col:col + H].set(b_lstm[k * H:(k + 1) * H])

    # GMM head packed into lane-aligned segments: means | sigmas | pi | d.
    w_head = jnp.zeros((ly["H_PAD"], ly["OUT_PAD"]), f32)
    b_head = jnp.zeros((1, ly["OUT_PAD"]), f32)
    w_head = w_head.at[0:H, ly["OFF_M"]:ly["OFF_M"] + GL].set(w_gmm_t[:, 0:GL])
    w_head = w_head.at[0:H, ly["OFF_S"]:ly["OFF_S"] + GL].set(w_gmm_t[:, GL:2 * GL])
    w_head = w_head.at[0:H, ly["OFF_P"]:ly["OFF_P"] + G].set(
        w_gmm_t[:, 2 * GL:2 * GL + G])
    w_head = w_head.at[0:H, ly["OFF_D"]:ly["OFF_D"] + 1].set(
        w_gmm_t[:, 2 * GL + G:2 * GL + G + 1])
    b_head = b_head.at[0, ly["OFF_M"]:ly["OFF_M"] + GL].set(b_gmm[0:GL])
    b_head = b_head.at[0, ly["OFF_S"]:ly["OFF_S"] + GL].set(b_gmm[GL:2 * GL])
    b_head = b_head.at[0, ly["OFF_P"]:ly["OFF_P"] + G].set(b_gmm[2 * GL:2 * GL + G])
    b_head = b_head.at[0, ly["OFF_D"]].set(b_gmm[2 * GL + G])
    # pi pad lanes: huge negative bias so log-softmax over the aligned 128-lane
    # block ignores them (exp underflows to exactly 0).
    b_head = b_head.at[0, ly["OFF_P"] + G:ly["OFF_P"] + ly["SEG_P"]].set(-1e30)

    return {
        "w_gates": w_gates.astype(compute_dtype),
        "b_gates": b_gates,                      # biases stay f32
        "w_head": w_head.astype(compute_dtype),
        "b_head": b_head,
    }


def _make_kernel(ly):
    XL_PAD, H_PAD = ly["XL_PAD"], ly["H_PAD"]
    OFF_M, OFF_S, OFF_P, OFF_D = ly["OFF_M"], ly["OFF_S"], ly["OFF_P"], ly["OFF_D"]
    SEG_M, SEG_S, SEG_P, SEG_D = ly["SEG_M"], ly["SEG_S"], ly["SEG_P"], ly["SEG_D"]

    def kernel(x_ref, h0_ref, c0_ref, wg_ref, bg_ref, wo_ref, bo_ref,
               head_ref, h_ref, c_ref, xh_ref):
        t = pl.program_id(0)

        # Initialize resident state blocks from the (aliased) initial state.
        @pl.when(t == 0)
        def _():
            h_ref[...] = h0_ref[...]
            c_ref[...] = c0_ref[...]

        h = h_ref[...]
        c = c_ref[...]

        # ---- fused LSTM gates: one MXU push of [x | h] @ [W_x ; W_h] ----
        xh_ref[:, 0:XL_PAD] = x_ref[...]          # aligned full-vreg stores
        xh_ref[:, XL_PAD:] = h
        w_dt = wg_ref.dtype                       # f32 or bf16 (v6e/v7x path)
        gates = jnp.dot(xh_ref[...].astype(w_dt), wg_ref[...],
                        preferred_element_type=jnp.float32) + bg_ref[...]

        # Each gate occupies its own 128-lane-aligned block; pad lanes give
        # i=f=o=0.5, g=0 which keeps the padded state lanes at exactly 0.
        i_g = jax.nn.sigmoid(gates[:, 0 * H_PAD:1 * H_PAD])
        f_g = jax.nn.sigmoid(gates[:, 1 * H_PAD:2 * H_PAD])
        g_g = jnp.tanh(gates[:, 2 * H_PAD:3 * H_PAD])
        o_g = jax.nn.sigmoid(gates[:, 3 * H_PAD:4 * H_PAD])

        c_new = f_g * c + i_g * g_g
        h_new = o_g * jnp.tanh(c_new)
        h_ref[...] = h_new
        c_ref[...] = c_new

        # ---- GMM linear head (lane-dense packed output slab) ----
        out = jnp.dot(h_new.astype(w_dt), wo_ref[...],
                      preferred_element_type=jnp.float32) + bo_ref[...]

        head_ref[:, OFF_M:OFF_M + SEG_M] = out[:, OFF_M:OFF_M + SEG_M]       # means
        head_ref[:, OFF_S:OFF_S + SEG_S] = jnp.exp(out[:, OFF_S:OFF_S + SEG_S])  # sigmas
        pi = out[:, OFF_P:OFF_P + SEG_P]
        m = jnp.max(pi, axis=-1, keepdims=True)
        lse = jnp.log(jnp.sum(jnp.exp(pi - m), axis=-1, keepdims=True))
        head_ref[:, OFF_P:OFF_P + SEG_P] = pi - m - lse                      # logpi
        head_ref[:, OFF_D:OFF_D + SEG_D] = out[:, OFF_D:OFF_D + SEG_D]       # d

    return kernel


def mdrnn_rollout_forward(action_seq, latent_seq, hidden, packed, *,
                          latents, actions, hiddens, gaussians):
    """T-step MDRNN rollout.

    action_seq: (T, B, A)  latent_seq: (T, B, L)  hidden: (h, c) each (B, H)
    Returns (means (T,B,G,L), sigmas (T,B,G,L), logpi (T,B,G), d (T,B), (h,c)).
    """
    ly = _layout(latents, actions, hiddens, gaussians)
    T, B, A = action_seq.shape
    L = latent_seq.shape[-1]
    H, G, GL = hiddens, gaussians, gaussians * latents
    assert A == actions and L == latents
    f32 = jnp.float32

    h0, c0 = hidden
    # One-time (per rollout) input prep, hoisted out of the time loop.
    x = jnp.concatenate([action_seq.astype(f32), latent_seq.astype(f32)], axis=-1)
    x = jnp.pad(x, ((0, 0), (0, 0), (0, ly["XL_PAD"] - (A + L))))
    h0p = jnp.pad(h0.astype(f32), ((0, 0), (0, ly["H_PAD"] - H)))
    c0p = jnp.pad(c0.astype(f32), ((0, 0), (0, ly["H_PAD"] - H)))

    const2 = lambda shape: pl.BlockSpec(shape, lambda t: (0, 0))
    grid_spec = pltpu.PrefetchScalarGridSpec(
        num_scalar_prefetch=0,
        grid=(T,),
        in_specs=[
            pl.BlockSpec((None, B, ly["XL_PAD"]), lambda t: (t, 0, 0)),  # x_t
            const2((B, ly["H_PAD"])),                                    # h0
            const2((B, ly["H_PAD"])),                                    # c0
            const2((ly["K_PAD"], 4 * ly["H_PAD"])),                      # W_gates (resident)
            const2((1, 4 * ly["H_PAD"])),                                # b_gates (resident)
            const2((ly["H_PAD"], ly["OUT_PAD"])),                        # W_head  (resident)
            const2((1, ly["OUT_PAD"])),                                  # b_head  (resident)
        ],
        out_specs=[
            pl.BlockSpec((None, B, ly["OUT_PAD"]), lambda t: (t, 0, 0)),  # head_t
            const2((B, ly["H_PAD"])),                                     # final h
            const2((B, ly["H_PAD"])),                                     # final c
        ],
        scratch_shapes=[pltpu.VMEM((B, ly["K_PAD"]), jnp.float32)],        # xh staging
    )

    head, h_t, c_t = pl.pallas_call(
        _make_kernel(ly),
        out_shape=(
            jax.ShapeDtypeStruct((T, B, ly["OUT_PAD"]), f32),
            jax.ShapeDtypeStruct((B, ly["H_PAD"]), f32),
            jax.ShapeDtypeStruct((B, ly["H_PAD"]), f32),
        ),
        grid_spec=grid_spec,
        input_output_aliases={1: 1, 2: 2},  # reuse h0/c0 buffers for final h/c
        compiler_params=pltpu.CompilerParams(
            dimension_semantics=("arbitrary",)),  # recurrent => sequential time axis
    )(x, h0p, c0p, packed["w_gates"], packed["b_gates"],
      packed["w_head"], packed["b_head"])

    means = head[..., ly["OFF_M"]:ly["OFF_M"] + GL].reshape(T, B, G, latents)
    sigmas = head[..., ly["OFF_S"]:ly["OFF_S"] + GL].reshape(T, B, G, latents)
    logpi = head[..., ly["OFF_P"]:ly["OFF_P"] + G]
    d = head[..., ly["OFF_D"]]
    return means, sigmas, logpi, d, (h_t[:, :H], c_t[:, :H])


def mdrnn_step(action, latent, hidden, packed, **dims):
    """Single-step API (previous behavior): action (B,A), latent (B,L)."""
    means, sigmas, logpi, d, hc = mdrnn_rollout_forward(
        action[None], latent[None], hidden, packed, **dims)
    return means[0], sigmas[0], logpi[0], d[0], hc


# ----------------------------- pure-JAX reference -----------------------------
def _ref_rollout(action_seq, latent_seq, hidden, params, *, latents, actions,
                 hiddens, gaussians):
    del actions  # implied by action_seq shape; kept so **dims works
    H, G, L = hiddens, gaussians, latents
    GL = G * L
    hp = jax.lax.Precision.HIGHEST
    h, c = hidden
    ms, ss, ls, ds = [], [], [], []
    for t in range(action_seq.shape[0]):
        x = jnp.concatenate([action_seq[t], latent_seq[t]], axis=-1)
        gates = (jnp.dot(x, params["w_ih"].T, precision=hp)
                 + jnp.dot(h, params["w_hh"].T, precision=hp)
                 + params["b_ih"] + params["b_hh"])
        i = jax.nn.sigmoid(gates[:, 0 * H:1 * H])
        f_ = jax.nn.sigmoid(gates[:, 1 * H:2 * H])
        g = jnp.tanh(gates[:, 2 * H:3 * H])
        o = jax.nn.sigmoid(gates[:, 3 * H:4 * H])
        c = f_ * c + i * g
        h = o * jnp.tanh(c)
        out = jnp.dot(h, params["w_gmm"].T, precision=hp) + params["b_gmm"]
        B = x.shape[0]
        ms.append(out[:, :GL].reshape(B, G, L))
        ss.append(jnp.exp(out[:, GL:2 * GL]).reshape(B, G, L))
        ls.append(jax.nn.log_softmax(out[:, 2 * GL:2 * GL + G], axis=-1))
        ds.append(out[:, 2 * GL + G])
    return (jnp.stack(ms), jnp.stack(ss), jnp.stack(ls), jnp.stack(ds), (h, c))


if __name__ == "__main__":
    B, L, A, H, G, T = 2, 8, 3, 32, 5, 8
    dims = dict(latents=L, actions=A, hiddens=H, gaussians=G)

    key = jax.random.PRNGKey(0)
    kp, ka, kl_, kh, kc = jax.random.split(key, 5)
    params = init_params(kp, L, A, H, G)
    action_seq = jax.random.normal(ka, (T, B, A), jnp.float32)
    latent_seq = jax.random.normal(kl_, (T, B, L), jnp.float32)
    h0 = jax.random.normal(kh, (B, H), jnp.float32)
    c0 = jax.random.normal(kc, (B, H), jnp.float32)

    # --- f32 weights: full rollout + correctness vs pure-JAX reference ---
    packed = prepare_params(params, **dims, compute_dtype=jnp.float32)
    means, sigmas, logpi, d, (hT, cT) = mdrnn_rollout_forward(
        action_seq, latent_seq, (h0, c0), packed, **dims)
    jax.block_until_ready((means, sigmas, logpi, d, hT, cT))

    r_means, r_sigmas, r_logpi, r_d, (r_h, r_c) = _ref_rollout(
        action_seq, latent_seq, (h0, c0), params, **dims)

    assert means.shape == (T, B, G, L) and sigmas.shape == (T, B, G, L)
    assert logpi.shape == (T, B, G) and d.shape == (T, B)
    assert hT.shape == (B, H) and cT.shape == (B, H)
    tol = dict(atol=1e-2, rtol=1e-2)
    np.testing.assert_allclose(np.asarray(means), np.asarray(r_means), **tol)
    np.testing.assert_allclose(np.asarray(sigmas), np.asarray(r_sigmas), **tol)
    np.testing.assert_allclose(np.asarray(logpi), np.asarray(r_logpi), **tol)
    np.testing.assert_allclose(np.asarray(d), np.asarray(r_d), **tol)
    np.testing.assert_allclose(np.asarray(hT), np.asarray(r_h), **tol)
    np.testing.assert_allclose(np.asarray(cT), np.asarray(r_c), **tol)

    # --- single-step API (previous behavior, T=1) ---
    m1, s1, lp1, d1, (h1, c1) = mdrnn_step(
        action_seq[0], latent_seq[0], (h0, c0), packed, **dims)
    jax.block_until_ready((m1, s1, lp1, d1, h1, c1))
    assert m1.shape == (B, G, L) and lp1.shape == (B, G) and d1.shape == (B,)
    np.testing.assert_allclose(np.asarray(m1), np.asarray(r_means[0]), **tol)

    # --- bf16 weight path (v6e/v7x MXU): run + sanity check ---
    packed_bf16 = prepare_params(params, **dims, compute_dtype=jnp.bfloat16)
    m2, s2, lp2, d2, (h2, c2) = mdrnn_rollout_forward(
        action_seq, latent_seq, (h0, c0), packed_bf16, **dims)
    jax.block_until_ready((m2, s2, lp2, d2, h2, c2))
    assert m2.shape == (T, B, G, L)
    for arr in (m2, s2, lp2, d2, h2, c2):
        assert bool(jnp.all(jnp.isfinite(arr)))

    print("KERNEL_OK")
</pallas_src>

<mosaic_0001>
module attributes {stable_mosaic.version = 11 : i64} {
  func.func @kernel(%arg0: i32, %arg1: memref<1x2x128xf32, #tpu.memory_space<vmem>>, %arg2: memref<2x128xf32, #tpu.memory_space<vmem>>, %arg3: memref<2x128xf32, #tpu.memory_space<vmem>>, %arg4: memref<256x512xf32, #tpu.memory_space<vmem>>, %arg5: memref<1x512xf32, #tpu.memory_space<vmem>>, %arg6: memref<128x512xf32, #tpu.memory_space<vmem>>, %arg7: memref<1x512xf32, #tpu.memory_space<vmem>>, %arg8: memref<1x2x512xf32, #tpu.memory_space<vmem>>, %arg9: memref<2x128xf32, #tpu.memory_space<vmem>>, %arg10: memref<2x128xf32, #tpu.memory_space<vmem>>, %arg11: memref<2x256xf32, #tpu.memory_space<vmem>>) attributes {dimension_semantics = [#tpu.dimension_semantics<arbitrary>], iteration_bounds = array<i64: 8>, scalar_prefetch = 0 : i64, scratch_operands = 1 : i64, tpu.core_type = #tpu.core_type<tc>, window_params = [{transform_indices = @transform_0, window_bounds = array<i64: 1, 2, 128>}, {pipeline_mode = #tpu.pipeline_mode<synchronous>, transform_indices = @transform_1, window_bounds = array<i64: 2, 128>}, {pipeline_mode = #tpu.pipeline_mode<synchronous>, transform_indices = @transform_2, window_bounds = array<i64: 2, 128>}, {pipeline_mode = #tpu.pipeline_mode<synchronous>, transform_indices = @transform_3, window_bounds = array<i64: 256, 512>}, {pipeline_mode = #tpu.pipeline_mode<synchronous>, transform_indices = @transform_4, window_bounds = array<i64: 1, 512>}, {pipeline_mode = #tpu.pipeline_mode<synchronous>, transform_indices = @transform_5, window_bounds = array<i64: 128, 512>}, {pipeline_mode = #tpu.pipeline_mode<synchronous>, transform_indices = @transform_6, window_bounds = array<i64: 1, 512>}, {transform_indices = @transform_7, window_bounds = array<i64: 1, 2, 512>}, {pipeline_mode = #tpu.pipeline_mode<synchronous>, transform_indices = @transform_8, window_bounds = array<i64: 2, 128>}, {pipeline_mode = #tpu.pipeline_mode<synchronous>, transform_indices = @transform_9, window_bounds = array<i64: 2, 128>}]} {
    %c0_i32 = arith.constant 0 : i32
    %0 = arith.cmpi eq, %arg0, %c0_i32 : i32
    %1 = arith.extui %0 : i1 to i32
    %c0_i32_0 = arith.constant 0 : i32
    %2 = arith.cmpi ne, %1, %c0_i32_0 : i32
    scf.if %2 {
      %c0_40 = arith.constant 0 : index
      %c0_41 = arith.constant 0 : index
      %76 = vector.load %arg2[%c0_40, %c0_41] : memref<2x128xf32, #tpu.memory_space<vmem>>, vector<2x128xf32>
      %c0_42 = arith.constant 0 : index
      %c0_43 = arith.constant 0 : index
      %77 = vector.load %arg9[%c0_42, %c0_43] : memref<2x128xf32, #tpu.memory_space<vmem>>, vector<2x128xf32>
      tpu.vector_store %arg9[%c0_42, %c0_43], %76 {strides = array<i32>} : memref<2x128xf32, #tpu.memory_space<vmem>>, vector<2x128xf32>,
      %c0_44 = arith.constant 0 : index
      %c0_45 = arith.constant 0 : index
      %78 = vector.load %arg3[%c0_44, %c0_45] : memref<2x128xf32, #tpu.memory_space<vmem>>, vector<2x128xf32>
      %c0_46 = arith.constant 0 : index
      %c0_47 = arith.constant 0 : index
      %79 = vector.load %arg10[%c0_46, %c0_47] : memref<2x128xf32, #tpu.memory_space<vmem>>, vector<2x128xf32>
      tpu.vector_store %arg10[%c0_46, %c0_47], %78 {strides = array<i32>} : memref<2x128xf32, #tpu.memory_space<vmem>>, vector<2x128xf32>,
    } else {
    }
    %c0 = arith.constant 0 : index
    %c0_1 = arith.constant 0 : index
    %3 = vector.load %arg9[%c0, %c0_1] : memref<2x128xf32, #tpu.memory_space<vmem>>, vector<2x128xf32>
    %c0_2 = arith.constant 0 : index
    %c0_3 = arith.constant 0 : index
    %4 = vector.load %arg10[%c0_2, %c0_3] : memref<2x128xf32, #tpu.memory_space<vmem>>, vector<2x128xf32>
    %c0_4 = arith.constant 0 : index
    %c0_5 = arith.constant 0 : index
    %c0_6 = arith.constant 0 : index
    %5 = vector.load %arg1[%c0_4, %c0_5, %c0_6] : memref<1x2x128xf32, #tpu.memory_space<vmem>>, vector<1x2x128xf32>
    %6 = vector.shape_cast %5 : vector<1x2x128xf32> to vector<2x128xf32>
    %c0_7 = arith.constant 0 : index
    %c0_8 = arith.constant 0 : index
    %7 = vector.load %arg11[%c0_7, %c0_8] : memref<2x256xf32, #tpu.memory_space<vmem>>, vector<2x128xf32>
    tpu.vector_store %arg11[%c0_7, %c0_8], %6 {strides = array<i32>} : memref<2x256xf32, #tpu.memory_space<vmem>>, vector<2x128xf32>,
    %c0_9 = arith.constant 0 : index
    %c128 = arith.constant 128 : index
    %8 = vector.load %arg11[%c0_9, %c128] : memref<2x256xf32, #tpu.memory_space<vmem>>, vector<2x128xf32>
    tpu.vector_store %arg11[%c0_9, %c128], %3 {strides = array<i32>} : memref<2x256xf32, #tpu.memory_space<vmem>>, vector<2x128xf32>,
    %c0_10 = arith.constant 0 : index
    %c0_11 = arith.constant 0 : index
    %9 = vector.load %arg11[%c0_10, %c0_11] : memref<2x256xf32, #tpu.memory_space<vmem>>, vector<2x256xf32>
    %c0_12 = arith.constant 0 : index
    %c0_13 = arith.constant 0 : index
    %10 = vector.load %arg4[%c0_12, %c0_13] : memref<256x512xf32, #tpu.memory_space<vmem>>, vector<256x512xf32>
    %cst = arith.constant dense<0.000000e+00> : vector<2x512xf32>
    %11 = tpu.matmul %9, %10, %cst {dimension_numbers = #tpu.dot_dimension_numbers<[1], [0], [0], [1], [0, 0, 1, 1], [], []>} : vector<2x256xf32>, vector<256x512xf32>, vector<2x512xf32> -> vector<2x512xf32>
    %c0_14 = arith.constant 0 : index
    %c0_15 = arith.constant 0 : index
    %12 = vector.load %arg5[%c0_14, %c0_15] : memref<1x512xf32, #tpu.memory_space<vmem>>, vector<1x512xf32>
    %13 = vector.broadcast %12 : vector<1x512xf32> to vector<2x512xf32>
    %14 = arith.addf %11, %13 : vector<2x512xf32>
    %15 = vector.extract_strided_slice %14 {offsets = [0, 0], sizes = [2, 128], strides = [1, 1]} : vector<2x512xf32> to vector<2x128xf32>
    %16 = arith.negf %15 : vector<2x128xf32>
    %17 = math.exp %16 : vector<2x128xf32>
    %cst_16 = arith.constant 1.000000e+00 : f32
    %18 = vector.broadcast %cst_16 : f32 to vector<2x128xf32>
    %19 = arith.addf %18, %17 : vector<2x128xf32>
    %20 = arith.divf %18, %19 : vector<2x128xf32>
    %21 = vector.extract_strided_slice %14 {offsets = [0, 128], sizes = [2, 128], strides = [1, 1]} : vector<2x512xf32> to vector<2x128xf32>
    %22 = arith.negf %21 : vector<2x128xf32>
    %23 = math.exp %22 : vector<2x128xf32>
    %cst_17 = arith.constant 1.000000e+00 : f32
    %24 = vector.broadcast %cst_17 : f32 to vector<2x128xf32>
    %25 = arith.addf %24, %23 : vector<2x128xf32>
    %26 = arith.divf %24, %25 : vector<2x128xf32>
    %27 = vector.extract_strided_slice %14 {offsets = [0, 256], sizes = [2, 128], strides = [1, 1]} : vector<2x512xf32> to vector<2x128xf32>
    %28 = math.tanh %27 : vector<2x128xf32>
    %29 = vector.extract_strided_slice %14 {offsets = [0, 384], sizes = [2, 128], strides = [1, 1]} : vector<2x512xf32> to vector<2x128xf32>
    %30 = arith.negf %29 : vector<2x128xf32>
    %31 = math.exp %30 : vector<2x128xf32>
    %cst_18 = arith.constant 1.000000e+00 : f32
    %32 = vector.broadcast %cst_18 : f32 to vector<2x128xf32>
    %33 = arith.addf %32, %31 : vector<2x128xf32>
    %34 = arith.divf %32, %33 : vector<2x128xf32>
    %35 = arith.mulf %26, %4 : vector<2x128xf32>
    %36 = arith.mulf %20, %28 : vector<2x128xf32>
    %37 = arith.addf %35, %36 : vector<2x128xf32>
    %38 = math.tanh %37 : vector<2x128xf32>
    %39 = arith.mulf %34, %38 : vector<2x128xf32>
    %c0_19 = arith.constant 0 : index
    %c0_20 = arith.constant 0 : index
    %40 = vector.load %arg9[%c0_19, %c0_20] : memref<2x128xf32, #tpu.memory_space<vmem>>, vector<2x128xf32>
    tpu.vector_store %arg9[%c0_19, %c0_20], %39 {strides = array<i32>} : memref<2x128xf32, #tpu.memory_space<vmem>>, vector<2x128xf32>,
    %c0_21 = arith.constant 0 : index
    %c0_22 = arith.constant 0 : index
    %41 = vector.load %arg10[%c0_21, %c0_22] : memref<2x128xf32, #tpu.memory_space<vmem>>, vector<2x128xf32>
    tpu.vector_store %arg10[%c0_21, %c0_22], %37 {strides = array<i32>} : memref<2x128xf32, #tpu.memory_space<vmem>>, vector<2x128xf32>,
    %c0_23 = arith.constant 0 : index
    %c0_24 = arith.constant 0 : index
    %42 = vector.load %arg6[%c0_23, %c0_24] : memref<128x512xf32, #tpu.memory_space<vmem>>, vector<128x512xf32>
    %cst_25 = arith.constant dense<0.000000e+00> : vector<2x512xf32>
    %43 = tpu.matmul %39, %42, %cst_25 {dimension_numbers = #tpu.dot_dimension_numbers<[1], [0], [0], [1], [0, 0, 1, 1], [], []>} : vector<2x128xf32>, vector<128x512xf32>, vector<2x512xf32> -> vector<2x512xf32>
    %c0_26 = arith.constant 0 : index
    %c0_27 = arith.constant 0 : index
    %44 = vector.load %arg7[%c0_26, %c0_27] : memref<1x512xf32, #tpu.memory_space<vmem>>, vector<1x512xf32>
    %45 = vector.broadcast %44 : vector<1x512xf32> to vector<2x512xf32>
    %46 = arith.addf %43, %45 : vector<2x512xf32>
    %47 = vector.extract_strided_slice %46 {offsets = [0, 0], sizes = [2, 128], strides = [1, 1]} : vector<2x512xf32> to vector<2x128xf32>
    %c0_28 = arith.constant 0 : index
    %c0_29 = arith.constant 0 : index
    %c0_30 = arith.constant 0 : index
    %48 = vector.load %arg8[%c0_28, %c0_29, %c0_30] : memref<1x2x512xf32, #tpu.memory_space<vmem>>, vector<1x2x128xf32>
    %49 = vector.shape_cast %48 : vector<1x2x128xf32> to vector<2x128xf32>
    %50 = vector.shape_cast %47 : vector<2x128xf32> to vector<1x2x128xf32>
    tpu.vector_store %arg8[%c0_28, %c0_29, %c0_30], %50 {strides = array<i32>} : memref<1x2x512xf32, #tpu.memory_space<vmem>>, vector<1x2x128xf32>,
    %51 = vector.extract_strided_slice %46 {offsets = [0, 128], sizes = [2, 128], strides = [1, 1]} : vector<2x512xf32> to vector<2x128xf32>
    %52 = math.exp %51 : vector<2x128xf32>
    %c0_31 = arith.constant 0 : index
    %c0_32 = arith.constant 0 : index
    %c128_33 = arith.constant 128 : index
    %53 = vector.load %arg8[%c0_31, %c0_32, %c128_33] : memref<1x2x512xf32, #tpu.memory_space<vmem>>, vector<1x2x128xf32>
    %54 = vector.shape_cast %53 : vector<1x2x128xf32> to vector<2x128xf32>
    %55 = vector.shape_cast %52 : vector<2x128xf32> to vector<1x2x128xf32>
    tpu.vector_store %arg8[%c0_31, %c0_32, %c128_33], %55 {strides = array<i32>} : memref<1x2x512xf32, #tpu.memory_space<vmem>>, vector<1x2x128xf32>,
    %56 = vector.extract_strided_slice %46 {offsets = [0, 256], sizes = [2, 128], strides = [1, 1]} : vector<2x512xf32> to vector<2x128xf32>
    %cst_34 = arith.constant dense<0xFF800000> : vector<2xf32>
    %57 = vector.multi_reduction <maximumf>, %56, %cst_34 [1] : vector<2x128xf32> to vector<2xf32>
    %58 = vector.shape_cast %57 : vector<2xf32> to vector<2x1xf32>
    %59 = vector.broadcast %58 : vector<2x1xf32> to vector<2x128xf32>
    %60 = arith.subf %56, %59 : vector<2x128xf32>
    %61 = math.exp %60 : vector<2x128xf32>
    %cst_35 = arith.constant dense<0.000000e+00> : vector<2xf32>
    %62 = vector.multi_reduction <add>, %61, %cst_35 [1] : vector<2x128xf32> to vector<2xf32>
    %63 = vector.shape_cast %62 : vector<2xf32> to vector<2x1xf32>
    %64 = math.log %63 : vector<2x1xf32>
    %65 = vector.broadcast %58 : vector<2x1xf32> to vector<2x128xf32>
    %66 = arith.subf %56, %65 : vector<2x128xf32>
    %67 = vector.broadcast %64 : vector<2x1xf32> to vector<2x128xf32>
    %68 = arith.subf %66, %67 : vector<2x128xf32>
    %c0_36 = arith.constant 0 : index
    %c0_37 = arith.constant 0 : index
    %c256 = arith.constant 256 : index
    %69 = vector.load %arg8[%c0_36, %c0_37, %c256] : memref<1x2x512xf32, #tpu.memory_space<vmem>>, vector<1x2x128xf32>
    %70 = vector.shape_cast %69 : vector<1x2x128xf32> to vector<2x128xf32>
    %71 = vector.shape_cast %68 : vector<2x128xf32> to vector<1x2x128xf32>
    tpu.vector_store %arg8[%c0_36, %c0_37, %c256], %71 {strides = array<i32>} : memref<1x2x512xf32, #tpu.memory_space<vmem>>, vector<1x2x128xf32>,
    %72 = vector.extract_strided_slice %46 {offsets = [0, 384], sizes = [2, 128], strides = [1, 1]} : vector<2x512xf32> to vector<2x128xf32>
    %c0_38 = arith.constant 0 : index
    %c0_39 = arith.constant 0 : index
    %c384 = arith.constant 384 : index
    %73 = vector.load %arg8[%c0_38, %c0_39, %c384] : memref<1x2x512xf32, #tpu.memory_space<vmem>>, vector<1x2x128xf32>
    %74 = vector.shape_cast %73 : vector<1x2x128xf32> to vector<2x128xf32>
    %75 = vector.shape_cast %72 : vector<2x128xf32> to vector<1x2x128xf32>
    tpu.vector_store %arg8[%c0_38, %c0_39, %c384], %75 {strides = array<i32>} : memref<1x2x512xf32, #tpu.memory_space<vmem>>, vector<1x2x128xf32>,
    return
  }
  func.func @transform_0(%arg0: i32) -> (i32, i32, i32) {
    %c0_i32 = arith.constant 0 : i32
    %c0_i32_0 = arith.constant 0 : i32
    %c0_i32_1 = arith.constant 0 : i32
    return %arg0, %c0_i32, %c0_i32_0 : i32, i32, i32
  }
  func.func @transform_1(%arg0: i32) -> (i32, i32) {
    %c0_i32 = arith.constant 0 : i32
    %c0_i32_0 = arith.constant 0 : i32
    %c0_i32_1 = arith.constant 0 : i32
    return %c0_i32, %c0_i32_0 : i32, i32
  }
  func.func @transform_2(%arg0: i32) -> (i32, i32) {
    %c0_i32 = arith.constant 0 : i32
    %c0_i32_0 = arith.constant 0 : i32
    %c0_i32_1 = arith.constant 0 : i32
    return %c0_i32, %c0_i32_0 : i32, i32
  }
  func.func @transform_3(%arg0: i32) -> (i32, i32) {
    %c0_i32 = arith.constant 0 : i32
    %c0_i32_0 = arith.constant 0 : i32
    %c0_i32_1 = arith.constant 0 : i32
    return %c0_i32, %c0_i32_0 : i32, i32
  }
  func.func @transform_4(%arg0: i32) -> (i32, i32) {
    %c0_i32 = arith.constant 0 : i32
    %c0_i32_0 = arith.constant 0 : i32
    %c0_i32_1 = arith.constant 0 : i32
    return %c0_i32, %c0_i32_0 : i32, i32
  }
  func.func @transform_5(%arg0: i32) -> (i32, i32) {
    %c0_i32 = arith.constant 0 : i32
    %c0_i32_0 = arith.constant 0 : i32
    %c0_i32_1 = arith.constant 0 : i32
    return %c0_i32, %c0_i32_0 : i32, i32
  }
  func.func @transform_6(%arg0: i32) -> (i32, i32) {
    %c0_i32 = arith.constant 0 : i32
    %c0_i32_0 = arith.constant 0 : i32
    %c0_i32_1 = arith.constant 0 : i32
    return %c0_i32, %c0_i32_0 : i32, i32
  }
  func.func @transform_7(%arg0: i32) -> (i32, i32, i32) {
    %c0_i32 = arith.constant 0 : i32
    %c0_i32_0 = arith.constant 0 : i32
    %c0_i32_1 = arith.constant 0 : i32
    return %arg0, %c0_i32, %c0_i32_0 : i32, i32, i32
  }
  func.func @transform_8(%arg0: i32) -> (i32, i32) {
    %c0_i32 = arith.constant 0 : i32
    %c0_i32_0 = arith.constant 0 : i32
    %c0_i32_1 = arith.constant 0 : i32
    return %c0_i32, %c0_i32_0 : i32, i32
  }
  func.func @transform_9(%arg0: i32) -> (i32, i32) {
    %c0_i32 = arith.constant 0 : i32
    %c0_i32_0 = arith.constant 0 : i32
    %c0_i32_1 = arith.constant 0 : i32
    return %c0_i32, %c0_i32_0 : i32, i32
  }
}

</mosaic_0001>

<llo_original>
// kernel: tpu_custom_call.1
$region0: #{tpu_custom_call.1}
  #allocation0 [shape = 'u32[]', space=smem, size = 0x4, offset = 0x4, fixed_abs, tag = 'smem constant byte address 0x4 - core index']
  #allocation1 [shape = 'u32[144,128]{1,0:T(1,128)}', space=vmem, size = 0x12000, scoped, tag = 'internal scratch']
  #allocation2 [shape = 'f32[2,256]{1,0:T(2,128)}', space=vmem, size = 0x800, scoped, tag = 'scratch operand']
  %s0 = inlined_call_operand.vmem [shape: f32[8,2,128], index: 0, kind: input, shape index: {}]
  %s1 = inlined_call_operand.hbm [shape: f32[2,128], index: 1, kind: input, shape index: {}, may-alias: {1,8}]
  %s2 = inlined_call_operand.hbm [shape: f32[2,128], index: 2, kind: input, shape index: {}, may-alias: {2,9}]
  %s3 = inlined_call_operand.hbm [shape: f32[256,512], index: 3, kind: input, shape index: {}]
  %s4 = inlined_call_operand.vmem [shape: f32[1,512], index: 4, kind: input, shape index: {}]
  %s5 = inlined_call_operand.hbm [shape: f32[128,512], index: 5, kind: input, shape index: {}]
  %s6 = inlined_call_operand.vmem [shape: f32[1,512], index: 6, kind: input, shape index: {}]
  %s7 = inlined_call_operand.hbm [shape: f32[8,2,512], index: 7, kind: output, shape index: {0}]
  %s8 = inlined_call_operand.hbm [shape: f32[2,128], index: 8, kind: output, shape index: {1}, may-alias: {1,8}]
  %s9 = inlined_call_operand.hbm [shape: f32[2,128], index: 9, kind: output, shape index: {2}, may-alias: {2,9}]
  %10 = xla_tuple %s7, %s8, %s9
  %s11 = sld [smem:[#allocation0]]
  $region97: #{tpu_custom_call.1} parent=0
    _
  %s13 = ssub.s32 1, %s11
  %s14 = scalar_select 0, %s13, %s11
  $region1: #{tpu_custom_call.1} parent=0
    #allocation3 [shape = 'u8[1024]{0}', space=vmem, size = 0x400, scoped, tag = 'input window, operand 1, single buffered']
    #allocation4 [shape = 's32[2]{0}', space=sflag, size = 0x8, scoped, tag = 'scoped memory for tpu_custom_call.1']
    #allocation5 [shape = 's32[2]{0}', space=sflag, size = 0x8, scoped, tag = 'scoped memory for tpu_custom_call.1']
    #allocation6 [shape = 'u8[1024]{0}', space=vmem, size = 0x400, scoped, tag = 'input window, operand 2, single buffered']
    #allocation7 [shape = 's32[1]{0}', space=sflag, size = 0x4, scoped, tag = 'scoped memory for tpu_custom_call.1']
    #allocation8 [shape = 'u8[524288]{0}', space=vmem, size = 0x80000, scoped, tag = 'input window, operand 3, single buffered']
    #allocation9 [shape = 'u8[262144]{0}', space=vmem, size = 0x40000, scoped, tag = 'input window, operand 5, single buffered']
    #allocation10 [shape = 's32[1]{0}', space=sflag, size = 0x4, scoped, tag = 'scoped memory for tpu_custom_call.1']
    #allocation11 [shape = 'u8[8192]{0}', space=vmem, size = 0x2000, scoped, tag = 'output window, operand 0']
    #allocation12 [shape = 'u8[1024]{0}', space=vmem, size = 0x400, scoped, tag = 'output window, operand 1, single buffered']
    #allocation13 [shape = 's32[1]{0}', space=sflag, size = 0x4, scoped, tag = 'scoped memory for tpu_custom_call.1']
    #allocation14 [shape = 'u8[1024]{0}', space=vmem, size = 0x400, scoped, tag = 'output window, operand 2, single buffered']
    %15 = vsyncpa [#allocation4], 0
    %16 = vsyncpa [#allocation7], 0
    %17 = vsyncpa [#allocation10], 0
    %18 = vsyncpa [#allocation5], 0
    %s19 = scalar_lea.sflag [#allocation5], 1
    %20 = vsyncpa %s19, 0
    %21 = vsyncpa [#allocation13], 0
    loop: start=0, step=1, limit=10
    $region2: #{tpu_custom_call.1} parent=1 // loop_pre_header
      _
    $region3: #{tpu_custom_call.1} parent=1 // loop_header
      %s23 = sphi 0, %s27
      %p24 = scmp.ge.s32.totalorder %s23, 10
      %s33 = sphi 0, %s35
      %s36 = sphi 0, %s33
      %s37 = sphi 0, %s36
      %s53 = sphi 0, %s37
      %s57 = sphi 0, %s57
      %s59 = sphi 0, %s57
      %s60 = sphi 0, %s59
      %s74 = sphi 0, %s60
      %s78 = sphi 0, %s78
      %s80 = sphi 0, %s78
      %s81 = sphi 0, %s80
      %s95 = sphi 0, %s81
      %s99 = sphi 0, %s99
      %s101 = sphi 0, %s99
      %s102 = sphi 0, %s101
      %s116 = sphi 0, %s102
      %s120 = sphi 0, %s120
      %s122 = sphi 0, %s120
      %s123 = sphi 0, %s122
      %s137 = sphi 0, %s123
      %s141 = sphi 0, %s141
      %s143 = sphi 0, %s141
      %s144 = sphi 0, %s143
      %s158 = sphi 0, %s144
      %s162 = sphi 0, %s162
      %s164 = sphi 0, %s162
      %s165 = sphi 0, %s164
      %s179 = sphi 0, %s165
      %s185 = sphi 0, %s187
      %s188 = sphi 0, %s185
      %s189 = sphi 0, %s188
      %s205 = sphi 0, %s189
      %s209 = sphi 0, %s209
      %s211 = sphi 0, %s209
      %s212 = sphi 0, %s211
      %s226 = sphi 0, %s212
      %s230 = sphi 0, %s230
      %s232 = sphi 0, %s230
      %s233 = sphi 0, %s232
      %s247 = sphi 0, %s233
    $region4: #{tpu_custom_call.1} parent=1 // loop_header_branch
      %26 = sbr.rel (%p24) target = $region8
    $region5: #{tpu_custom_call.1} parent=1 // loop_body
      %s28 = ssub.s32 %s23, 1
      %s29 = ssub.s32 %s23, 2
      %s30 = sadd.s32 %s23, 1
      %s31 = ssub.s32 %s23, %s30
      %p32 = scmp.eq.s32.totalorder %s31, 0
      %s34 = sadd.s32 %s33, 1
      %s35 = scalar_select %p32, %s33, %s34
      %p38 = pneg %p32
      %p39 = scmp.eq.s32.totalorder %s23, 7
      %p40 = por %p38, %p39
      %p41 = scmp.ne.s32.totalorder %s33, %s36
      %p42 = scmp.eq.s32.totalorder %s23, 0
      %p43 = por %p41, %p42
      %p44 = scmp.ne.s32.totalorder %s33, %s36
      %p45 = scmp.eq.s32.totalorder %s28, 7
      %p46 = por %p44, %p45
      %p47 = scmp.ne.s32.totalorder %s36, %s37
      %p48 = scmp.eq.s32.totalorder %s28, 0
      %p49 = por %p47, %p48
      %p50 = scmp.ne.s32.totalorder %s36, %s37
      %p51 = scmp.eq.s32.totalorder %s29, 7
      %p52 = por %p50, %p51
      %p54 = scmp.ne.s32.totalorder %s37, %s53
      %p55 = scmp.eq.s32.totalorder %s29, 0
      %p56 = por %p54, %p55
      %s58 = sadd.s32 %s57, 1
      %p61 = scmp.eq.s32.totalorder %s23, 7
      %p62 = scmp.ne.s32.totalorder %s57, %s59
      %p63 = scmp.eq.s32.totalorder %s23, 0
      %p64 = por %p62, %p63
      %p65 = scmp.ne.s32.totalorder %s57, %s59
      %p66 = scmp.eq.s32.totalorder %s28, 7
      %p67 = por %p65, %p66
      %p68 = scmp.ne.s32.totalorder %s59, %s60
      %p69 = scmp.eq.s32.totalorder %s28, 0
      %p70 = por %p68, %p69
      %p71 = scmp.ne.s32.totalorder %s59, %s60
      %p72 = scmp.eq.s32.totalorder %s29, 7
      %p73 = por %p71, %p72
      %p75 = scmp.ne.s32.totalorder %s60, %s74
      %p76 = scmp.eq.s32.totalorder %s29, 0
      %p77 = por %p75, %p76
      %s79 = sadd.s32 %s78, 1
      %p82 = scmp.eq.s32.totalorder %s23, 7
      %p83 = scmp.ne.s32.totalorder %s78, %s80
      %p84 = scmp.eq.s32.totalorder %s23, 0
      %p85 = por %p83, %p84
      %p86 = scmp.ne.s32.totalorder %s78, %s80
      %p87 = scmp.eq.s32.totalorder %s28, 7
      %p88 = por %p86, %p87
      %p89 = scmp.ne.s32.totalorder %s80, %s81
      %p90 = scmp.eq.s32.totalorder %s28, 0
      %p91 = por %p89, %p90
      %p92 = scmp.ne.s32.totalorder %s80, %s81
      %p93 = scmp.eq.s32.totalorder %s29, 7
      %p94 = por %p92, %p93
      %p96 = scmp.ne.s32.totalorder %s81, %s95
      %p97 = scmp.eq.s32.totalorder %s29, 0
      %p98 = por %p96, %p97
      %s100 = sadd.s32 %s99, 1
      %p103 = scmp.eq.s32.totalorder %s23, 7
      %p104 = scmp.ne.s32.totalorder %s99, %s101
      %p105 = scmp.eq.s32.totalorder %s23, 0
      %p106 = por %p104, %p105
      %p107 = scmp.ne.s32.totalorder %s99, %s101
      %p108 = scmp.eq.s32.totalorder %s28, 7
      %p109 = por %p107, %p108
      %p110 = scmp.ne.s32.totalorder %s101, %s102
      %p111 = scmp.eq.s32.totalorder %s28, 0
      %p112 = por %p110, %p111
      %p113 = scmp.ne.s32.totalorder %s101, %s102
      %p114 = scmp.eq.s32.totalorder %s29, 7
      %p115 = por %p113, %p114
      %p117 = scmp.ne.s32.totalorder %s102, %s116
      %p118 = scmp.eq.s32.totalorder %s29, 0
      %p119 = por %p117, %p118
      %s121 = sadd.s32 %s120, 1
      %p124 = scmp.eq.s32.totalorder %s23, 7
      %p125 = scmp.ne.s32.totalorder %s120, %s122
      %p126 = scmp.eq.s32.totalorder %s23, 0
      %p127 = por %p125, %p126
      %p128 = scmp.ne.s32.totalorder %s120, %s122
      %p129 = scmp.eq.s32.totalorder %s28, 7
      %p130 = por %p128, %p129
      %p131 = scmp.ne.s32.totalorder %s122, %s123
      %p132 = scmp.eq.s32.totalorder %s28, 0
      %p133 = por %p131, %p132
      %p134 = scmp.ne.s32.totalorder %s122, %s123
      %p135 = scmp.eq.s32.totalorder %s29, 7
      %p136 = por %p134, %p135
      %p138 = scmp.ne.s32.totalorder %s123, %s137
      %p139 = scmp.eq.s32.totalorder %s29, 0
      %p140 = por %p138, %p139
      %s142 = sadd.s32 %s141, 1
      %p145 = scmp.eq.s32.totalorder %s23, 7
      %p146 = scmp.ne.s32.totalorder %s141, %s143
      %p147 = scmp.eq.s32.totalorder %s23, 0
      %p148 = por %p146, %p147
      %p149 = scmp.ne.s32.totalorder %s141, %s143
      %p150 = scmp.eq.s32.totalorder %s28, 7
      %p151 = por %p149, %p150
      %p152 = scmp.ne.s32.totalorder %s143, %s144
      %p153 = scmp.eq.s32.totalorder %s28, 0
      %p154 = por %p152, %p153
      %p155 = scmp.ne.s32.totalorder %s143, %s144
      %p156 = scmp.eq.s32.totalorder %s29, 7
      %p157 = por %p155, %p156
      %p159 = scmp.ne.s32.totalorder %s144, %s158
      %p160 = scmp.eq.s32.totalorder %s29, 0
      %p161 = por %p159, %p160
      %s163 = sadd.s32 %s162, 1
      %p166 = scmp.eq.s32.totalorder %s23, 7
      %p167 = scmp.ne.s32.totalorder %s162, %s164
      %p168 = scmp.eq.s32.totalorder %s23, 0
      %p169 = por %p167, %p168
      %p170 = scmp.ne.s32.totalorder %s162, %s164
      %p171 = scmp.eq.s32.totalorder %s28, 7
      %p172 = por %p170, %p171
      %p173 = scmp.ne.s32.totalorder %s164, %s165
      %p174 = scmp.eq.s32.totalorder %s28, 0
      %p175 = por %p173, %p174
      %p176 = scmp.ne.s32.totalorder %s164, %s165
      %p177 = scmp.eq.s32.totalorder %s29, 7
      %p178 = por %p176, %p177
      %p180 = scmp.ne.s32.totalorder %s165, %s179
      %p181 = scmp.eq.s32.totalorder %s29, 0
      %p182 = por %p180, %p181
      %s183 = ssub.s32 %s23, %s30
      %p184 = scmp.eq.s32.totalorder %s183, 0
      %s186 = sadd.s32 %s185, 1
      %s187 = scalar_select %p184, %s185, %s186
      %p190 = pneg %p184
      %p191 = scmp.eq.s32.totalorder %s23, 7
      %p192 = por %p190, %p191
      %p193 = scmp.ne.s32.totalorder %s185, %s188
      %p194 = scmp.eq.s32.totalorder %s23, 0
      %p195 = por %p193, %p194
      %p196 = scmp.ne.s32.totalorder %s185, %s188
      %p197 = scmp.eq.s32.totalorder %s28, 7
      %p198 = por %p196, %p197
      %p199 = scmp.ne.s32.totalorder %s188, %s189
      %p200 = scmp.eq.s32.totalorder %s28, 0
      %p201 = por %p199, %p200
      %p202 = scmp.ne.s32.totalorder %s188, %s189
      %p203 = scmp.eq.s32.totalorder %s29, 7
      %p204 = por %p202, %p203
      %p206 = scmp.ne.s32.totalorder %s189, %s205
      %p207 = scmp.eq.s32.totalorder %s29, 0
      %p208 = por %p206, %p207
      %s210 = sadd.s32 %s209, 1
      %p213 = scmp.eq.s32.totalorder %s23, 7
      %p214 = scmp.ne.s32.totalorder %s209, %s211
      %p215 = scmp.eq.s32.totalorder %s23, 0
      %p216 = por %p214, %p215
      %p217 = scmp.ne.s32.totalorder %s209, %s211
      %p218 = scmp.eq.s32.totalorder %s28, 7
      %p219 = por %p217, %p218
      %p220 = scmp.ne.s32.totalorder %s211, %s212
      %p221 = scmp.eq.s32.totalorder %s28, 0
      %p222 = por %p220, %p221
      %p223 = scmp.ne.s32.totalorder %s211, %s212
      %p224 = scmp.eq.s32.totalorder %s29, 7
      %p225 = por %p223, %p224
      %p227 = scmp.ne.s32.totalorder %s212, %s226
      %p228 = scmp.eq.s32.totalorder %s29, 0
      %p229 = por %p227, %p228
      %s231 = sadd.s32 %s230, 1
      %p234 = scmp.eq.s32.totalorder %s23, 7
      %p235 = scmp.ne.s32.totalorder %s230, %s232
      %p236 = scmp.eq.s32.totalorder %s23, 0
      %p237 = por %p235, %p236
      %p238 = scmp.ne.s32.totalorder %s230, %s232
      %p239 = scmp.eq.s32.totalorder %s28, 7
      %p240 = por %p238, %p239
      %p241 = scmp.ne.s32.totalorder %s232, %s233
      %p242 = scmp.eq.s32.totalorder %s28, 0
      %p243 = por %p241, %p242
      %p244 = scmp.ne.s32.totalorder %s232, %s233
      %p245 = scmp.eq.s32.totalorder %s29, 7
      %p246 = por %p244, %p245
      %p248 = scmp.ne.s32.totalorder %s233, %s247
      %p249 = scmp.eq.s32.totalorder %s29, 0
      %p250 = por %p248, %p249
      %p251 = scmp.le.s32.totalorder 1, %s23
      %p252 = scmp.lt.s32.totalorder %s23, 9
      %p253 = pnand %p251, %p252
      %p254 = pneg %p253
      // Predicated region
      $region9: #{tpu_custom_call.1} parent=5 // pred_check
        _
      $region10: #{tpu_custom_call.1} parent=5 // pred_check_branch
        %256 = sbr.rel (%p253) target = $region12
      $region11: #{tpu_custom_call.1} parent=5 // pred_region
        %s257 = ssub.s32 %s23, 1
        // Predicated region
        $region13: #{tpu_custom_call.1} parent=11 // pred_check
          %p258 = pneg %p70
        $region14: #{tpu_custom_call.1} parent=11 // pred_check_branch
          %260 = sbr.rel (%p258) target = $region16
        $region15: #{tpu_custom_call.1} parent=11 // pred_region
          %s262 = ssub.s32 32, 32
          %263 = vsyncadd [#allocation4], %s262
          %s265 = sshll.u32 [#allocation3], 4
          %s266 = int_to_ptr.vmem [resolvable:$true] %s265
          %268 = dma.hbm_to_vmem [thread:$0]  %s1, 32, %s266, [#allocation4]
        $region16: #{tpu_custom_call.1} parent=11 // pred_fallthru
          _
        // Predicated region
        $region17: #{tpu_custom_call.1} parent=11 // pred_check
          %p269 = pneg %p91
        $region18: #{tpu_custom_call.1} parent=11 // pred_check_branch
          %271 = sbr.rel (%p269) target = $region20
        $region19: #{tpu_custom_call.1} parent=11 // pred_region
          %s273 = ssub.s32 32, 32
          %274 = vsyncadd [#allocation7], %s273
          %s276 = sshll.u32 [#allocation6], 4
          %s277 = int_to_ptr.vmem [resolvable:$true] %s276
          %279 = dma.hbm_to_vmem [thread:$0]  %s2, 32, %s277, [#allocation7]
        $region20: #{tpu_custom_call.1} parent=11 // pred_fallthru
          _
        // Predicated region
        $region21: #{tpu_custom_call.1} parent=11 // pred_check
          %p280 = pneg %p112
        $region22: #{tpu_custom_call.1} parent=11 // pred_check_branch
          %282 = sbr.rel (%p280) target = $region24
        $region23: #{tpu_custom_call.1} parent=11 // pred_region
          %s284 = ssub.s32 16384, 16384
          %285 = vsyncadd [#allocation7], %s284
          %s286 = sshll.u32 [#allocation8], 4
          %s287 = int_to_ptr.vmem [resolvable:$true] %s286
          %292 = dma.hbm_to_vmem [thread:$0]  %s3, 16384, %s287, [#allocation7], 512, 512, 32
        $region24: #{tpu_custom_call.1} parent=11 // pred_fallthru
          _
        // Predicated region
        $region25: #{tpu_custom_call.1} parent=11 // pred_check
          %p293 = pneg %p133
        $region26: #{tpu_custom_call.1} parent=11 // pred_check_branch
          %295 = sbr.rel (%p293) target = $region28
        $region27: #{tpu_custom_call.1} parent=11 // pred_region
          _
        $region28: #{tpu_custom_call.1} parent=11 // pred_fallthru
          _
        // Predicated region
        $region29: #{tpu_custom_call.1} parent=11 // pred_check
          %p296 = pneg %p154
        $region30: #{tpu_custom_call.1} parent=11 // pred_check_branch
          %298 = sbr.rel (%p296) target = $region32
        $region31: #{tpu_custom_call.1} parent=11 // pred_region
          %s300 = ssub.s32 8192, 8192
          %301 = vsyncadd [#allocation10], %s300
          %s302 = sshll.u32 [#allocation9], 4
          %s303 = int_to_ptr.vmem [resolvable:$true] %s302
          %308 = dma.hbm_to_vmem [thread:$0]  %s5, 8192, %s303, [#allocation10], 512, 512, 32
        $region32: #{tpu_custom_call.1} parent=11 // pred_fallthru
          _
        // Predicated region
        $region33: #{tpu_custom_call.1} parent=11 // pred_check
          %p309 = pneg %p175
        $region34: #{tpu_custom_call.1} parent=11 // pred_check_branch
          %311 = sbr.rel (%p309) target = $region36
        $region35: #{tpu_custom_call.1} parent=11 // pred_region
          _
        $region36: #{tpu_custom_call.1} parent=11 // pred_fallthru
          _
      $region12: #{tpu_custom_call.1} parent=5 // pred_fallthru
        _
      %p312 = scmp.lt.s32.totalorder %s23, 8
      // Predicated region
      $region37: #{tpu_custom_call.1} parent=5 // pred_check
        %p313 = pneg %p312
      $region38: #{tpu_custom_call.1} parent=5 // pred_check_branch
        %315 = sbr.rel (%p313) target = $region40
      $region39: #{tpu_custom_call.1} parent=5 // pred_region
        // Predicated region
        $region41: #{tpu_custom_call.1} parent=39 // pred_check
          %p316 = pneg %p43
        $region42: #{tpu_custom_call.1} parent=39 // pred_check_branch
          %318 = sbr.rel (%p316) target = $region44
        $region43: #{tpu_custom_call.1} parent=39 // pred_region
          %p319 = scmp.lt.s32.totalorder %s23, 7
          %s320 = scalar_select %p319, %s23, 7
          %s321 = smul.addr %s320, 2
          %s322 = scalar_lea.vmem %s0, %s321
        $region44: #{tpu_custom_call.1} parent=39 // pred_fallthru
          _
      $region40: #{tpu_custom_call.1} parent=5 // pred_fallthru
        _
      %p323 = scmp.le.s32.totalorder 1, %s23
      %p324 = scmp.lt.s32.totalorder %s23, 9
      %p325 = pnand %p323, %p324
      %p326 = pneg %p325
      // Predicated region
      $region45: #{tpu_custom_call.1} parent=5 // pred_check
        _
      $region46: #{tpu_custom_call.1} parent=5 // pred_check_branch
        %328 = sbr.rel (%p325) target = $region48
      $region47: #{tpu_custom_call.1} parent=5 // pred_region
        %s329 = ssub.s32 %s23, 1
        // Predicated region
        $region49: #{tpu_custom_call.1} parent=47 // pred_check
          %p330 = pneg %p70
        $region50: #{tpu_custom_call.1} parent=47 // pred_check_branch
          %332 = sbr.rel (%p330) target = $region52
        $region51: #{tpu_custom_call.1} parent=47 // pred_region
          %333 = dma.done [#allocation4], 32
        $region52: #{tpu_custom_call.1} parent=47 // pred_fallthru
          _
        // Predicated region
        $region53: #{tpu_custom_call.1} parent=47 // pred_check
          %p334 = pneg %p91
        $region54: #{tpu_custom_call.1} parent=47 // pred_check_branch
          %336 = sbr.rel (%p334) target = $region56
        $region55: #{tpu_custom_call.1} parent=47 // pred_region
          %337 = dma.done [#allocation7], 32
        $region56: #{tpu_custom_call.1} parent=47 // pred_fallthru
          _
        // Predicated region
        $region57: #{tpu_custom_call.1} parent=47 // pred_check
          %p338 = pneg %p112
        $region58: #{tpu_custom_call.1} parent=47 // pred_check_branch
          %340 = sbr.rel (%p338) target = $region60
        $region59: #{tpu_custom_call.1} parent=47 // pred_region
          %341 = dma.done [#allocation7], 16384
        $region60: #{tpu_custom_call.1} parent=47 // pred_fallthru
          _
        // Predicated region
        $region61: #{tpu_custom_call.1} parent=47 // pred_check
          %p342 = pneg %p154
        $region62: #{tpu_custom_call.1} parent=47 // pred_check_branch
          %344 = sbr.rel (%p342) target = $region64
        $region63: #{tpu_custom_call.1} parent=47 // pred_region
          %345 = dma.done [#allocation10], 8192
        $region64: #{tpu_custom_call.1} parent=47 // pred_fallthru
          _
        %p346 = scmp.lt.s32.totalorder %s28, 7
        %s347 = scalar_select %p346, %s28, 7
        %s348 = smul.addr %s347, 2
        %s349 = scalar_lea.vmem %s0, %s348
        %p350 = pneg %p49
        %p351 = pneg %p46
        %p352 = pneg %p70
        %p353 = pneg %p67
        %p354 = pneg %p91
        %p355 = pneg %p88
        %p356 = pneg %p112
        %p357 = pneg %p109
        %p358 = pneg %p133
        %p359 = pneg %p130
        %p360 = pneg %p154
        %p361 = pneg %p151
        %p362 = pneg %p175
        %p363 = pneg %p172
        %p364 = pneg %p201
        %p365 = pneg %p198
        %s366 = sand.u32 %s188, 1
        %s367 = scalar_lea.sflag [#allocation5], %s366
        %s368 = sand.u32 %s188, 1
        %s369 = smul.addr %s368, 8
        %s370 = scalar_lea.vmem [#allocation11], %s369
        %p371 = pneg %p222
        %p372 = pneg %p219
        %p373 = pneg %p243
        %p374 = pneg %p240
        %p375 = scmp.lt.s32.totalorder %s28, 7
        %s376 = scalar_select %p375, %s28, 7
        %s377 = smul.addr %s376, 2
        %s378 = scalar_lea.vmem %s0, %s377
        %p379 = scmp.eq.s32.totalorder %s28, 0
        // Predicated region
        $region65: #{tpu_custom_call.1} parent=47 // pred_check
          %p380 = pneg %p379
        $region66: #{tpu_custom_call.1} parent=47 // pred_check_branch
          %382 = sbr.rel (%p380) target = $region68
        $region67: #{tpu_custom_call.1} parent=47 // pred_region
          %v383 = vld [vmem:[#allocation3] sm:$0x3]
          %384 = vst [vmem:[#allocation12] sm:$0x3] %v383
          %v385 = vld [vmem:[#allocation6] sm:$0x3]
          %386 = vst [vmem:[#allocation14] sm:$0x3] %v385
        $region68: #{tpu_custom_call.1} parent=47 // pred_fallthru
          _
        %v387 = vld [vmem:[#allocation12] sm:$0x3]
        %v388 = vld [vmem:[#allocation14] sm:$0x3]
        %v389 = vld [vmem:[%s378] sm:$0x3]
        %390 = vst [vmem:[#allocation2] sm:$0x3] %v389
        %391 = vst [vmem:[#allocation2 + $0x2] sm:$0x3] %v387
        %v392 = vld [vmem:[#allocation2] sm:$0xf]
        %v393 = vld [vmem:[#allocation8] sm:$0xff]
        %v394 = vld [vmem:[#allocation8 + $0x8] sm:$0xff]
        %v395 = vld [vmem:[#allocation8 + $0x10] sm:$0xff]
        %v396 = vld [vmem:[#allocation8 + $0x18] sm:$0xff]
        %v397 = vld [vmem:[#allocation8 + $0x20] sm:$0xff]
        %v398 = vld [vmem:[#allocation8 + $0x28] sm:$0xff]
        %v399 = vld [vmem:[#allocation8 + $0x30] sm:$0xff]
        %v400 = vld [vmem:[#allocation8 + $0x38] sm:$0xff]
        %v401 = vld [vmem:[#allocation8 + $0x40] sm:$0xff]
        %v402 = vld [vmem:[#allocation8 + $0x48] sm:$0xff]
        %v403 = vld [vmem:[#allocation8 + $0x50] sm:$0xff]
        %v404 = vld [vmem:[#allocation8 + $0x58] sm:$0xff]
        %v405 = vld [vmem:[#allocation8 + $0x60] sm:$0xff]
        %v406 = vld [vmem:[#allocation8 + $0x68] sm:$0xff]
        %v407 = vld [vmem:[#allocation8 + $0x70] sm:$0xff]
        %v408 = vld [vmem:[#allocation8 + $0x78] sm:$0xff]
        %v409 = vld [vmem:[#allocation8 + $0x80] sm:$0xff]
        %v410 = vld [vmem:[#allocation8 + $0x88] sm:$0xff]
        %v411 = vld [vmem:[#allocation8 + $0x90] sm:$0xff]
        %v412 = vld [vmem:[#allocation8 + $0x98] sm:$0xff]
        %v413 = vld [vmem:[#allocation8 + $0xa0] sm:$0xff]
        %v414 = vld [vmem:[#allocation8 + $0xa8] sm:$0xff]
        %v415 = vld [vmem:[#allocation8 + $0xb0] sm:$0xff]
        %v416 = vld [vmem:[#allocation8 + $0xb8] sm:$0xff]
        %v417 = vld [vmem:[#allocation8 + $0xc0] sm:$0xff]
        %v418 = vld [vmem:[#allocation8 + $0xc8] sm:$0xff]
        %v419 = vld [vmem:[#allocation8 + $0xd0] sm:$0xff]
        %v420 = vld [vmem:[#allocation8 + $0xd8] sm:$0xff]
        %v421 = vld [vmem:[#allocation8 + $0xe0] sm:$0xff]
        %v422 = vld [vmem:[#allocation8 + $0xe8] sm:$0xff]
        %v423 = vld [vmem:[#allocation8 + $0xf0] sm:$0xff]
        %v424 = vld [vmem:[#allocation8 + $0xf8] sm:$0xff]
        %v425 = vld [vmem:[#allocation8 + $0x100] sm:$0xff]
        %v426 = vld [vmem:[#allocation8 + $0x108] sm:$0xff]
        %v427 = vld [vmem:[#allocation8 + $0x110] sm:$0xff]
        %v428 = vld [vmem:[#allocation8 + $0x118] sm:$0xff]
        %v429 = vld [vmem:[#allocation8 + $0x120] sm:$0xff]
        %v430 = vld [vmem:[#allocation8 + $0x128] sm:$0xff]
        %v431 = vld [vmem:[#allocation8 + $0x130] sm:$0xff]
        %v432 = vld [vmem:[#allocation8 + $0x138] sm:$0xff]
        %v433 = vld [vmem:[#allocation8 + $0x140] sm:$0xff]
        %v434 = vld [vmem:[#allocation8 + $0x148] sm:$0xff]
        %v435 = vld [vmem:[#allocation8 + $0x150] sm:$0xff]
        %v436 = vld [vmem:[#allocation8 + $0x158] sm:$0xff]
        %v437 = vld [vmem:[#allocation8 + $0x160] sm:$0xff]
        %v438 = vld [vmem:[#allocation8 + $0x168] sm:$0xff]
        %v439 = vld [vmem:[#allocation8 + $0x170] sm:$0xff]
        %v440 = vld [vmem:[#allocation8 + $0x178] sm:$0xff]
        %v441 = vld [vmem:[#allocation8 + $0x180] sm:$0xff]
        %v442 = vld [vmem:[#allocation8 + $0x188] sm:$0xff]
        %v443 = vld [vmem:[#allocation8 + $0x190] sm:$0xff]
        %v444 = vld [vmem:[#allocation8 + $0x198] sm:$0xff]
        %v445 = vld [vmem:[#allocation8 + $0x1a0] sm:$0xff]
        %v446 = vld [vmem:[#allocation8 + $0x1a8] sm:$0xff]
        %v447 = vld [vmem:[#allocation8 + $0x1b0] sm:$0xff]
        %v448 = vld [vmem:[#allocation8 + $0x1b8] sm:$0xff]
        %v449 = vld [vmem:[#allocation8 + $0x1c0] sm:$0xff]
        %v450 = vld [vmem:[#allocation8 + $0x1c8] sm:$0xff]
        %v451 = vld [vmem:[#allocation8 + $0x1d0] sm:$0xff]
        %v452 = vld [vmem:[#allocation8 + $0x1d8] sm:$0xff]
        %v453 = vld [vmem:[#allocation8 + $0x1e0] sm:$0xff]
        %v454 = vld [vmem:[#allocation8 + $0x1e8] sm:$0xff]
        %v455 = vld [vmem:[#allocation8 + $0x1f0] sm:$0xff]
        %v456 = vld [vmem:[#allocation8 + $0x1f8] sm:$0xff]
        %v457 = vld [vmem:[#allocation8 + $0x200] sm:$0xff]
        %v458 = vld [vmem:[#allocation8 + $0x208] sm:$0xff]
        %v459 = vld [vmem:[#allocation8 + $0x210] sm:$0xff]
        %v460 = vld [vmem:[#allocation8 + $0x218] sm:$0xff]
        %v461 = vld [vmem:[#allocation8 + $0x220] sm:$0xff]
        %v462 = vld [vmem:[#allocation8 + $0x228] sm:$0xff]
        %v463 = vld [vmem:[#allocation8 + $0x230] sm:$0xff]
        %v464 = vld [vmem:[#allocation8 + $0x238] sm:$0xff]
        %v465 = vld [vmem:[#allocation8 + $0x240] sm:$0xff]
        %v466 = vld [vmem:[#allocation8 + $0x248] sm:$0xff]
        %v467 = vld [vmem:[#allocation8 + $0x250] sm:$0xff]
        %v468 = vld [vmem:[#allocation8 + $0x258] sm:$0xff]
        %v469 = vld [vmem:[#allocation8 + $0x260] sm:$0xff]
        %v470 = vld [vmem:[#allocation8 + $0x268] sm:$0xff]
        %v471 = vld [vmem:[#allocation8 + $0x270] sm:$0xff]
        %v472 = vld [vmem:[#allocation8 + $0x278] sm:$0xff]
        %v473 = vld [vmem:[#allocation8 + $0x280] sm:$0xff]
        %v474 = vld [vmem:[#allocation8 + $0x288] sm:$0xff]
        %v475 = vld [vmem:[#allocation8 + $0x290] sm:$0xff]
        %v476 = vld [vmem:[#allocation8 + $0x298] sm:$0xff]
        %v477 = vld [vmem:[#allocation8 + $0x2a0] sm:$0xff]
        %v478 = vld [vmem:[#allocation8 + $0x2a8] sm:$0xff]
        %v479 = vld [vmem:[#allocation8 + $0x2b0] sm:$0xff]
        %v480 = vld [vmem:[#allocation8 + $0x2b8] sm:$0xff]
        %v481 = vld [vmem:[#allocation8 + $0x2c0] sm:$0xff]
        %v482 = vld [vmem:[#allocation8 + $0x2c8] sm:$0xff]
        %v483 = vld [vmem:[#allocation8 + $0x2d0] sm:$0xff]
        %v484 = vld [vmem:[#allocation8 + $0x2d8] sm:$0xff]
        %v485 = vld [vmem:[#allocation8 + $0x2e0] sm:$0xff]
        %v486 = vld [vmem:[#allocation8 + $0x2e8] sm:$0xff]
        %v487 = vld [vmem:[#allocation8 + $0x2f0] sm:$0xff]
        %v488 = vld [vmem:[#allocation8 + $0x2f8] sm:$0xff]
        %v489 = vld [vmem:[#allocation8 + $0x300] sm:$0xff]
        %v490 = vld [vmem:[#allocation8 + $0x308] sm:$0xff]
        %v491 = vld [vmem:[#allocation8 + $0x310] sm:$0xff]
        %v492 = vld [vmem:[#allocation8 + $0x318] sm:$0xff]
        %v493 = vld [vmem:[#allocation8 + $0x320] sm:$0xff]
        %v494 = vld [vmem:[#allocation8 + $0x328] sm:$0xff]
        %v495 = vld [vmem:[#allocation8 + $0x330] sm:$0xff]
        %v496 = vld [vmem:[#allocation8 + $0x338] sm:$0xff]
        %v497 = vld [vmem:[#allocation8 + $0x340] sm:$0xff]
        %v498 = vld [vmem:[#allocation8 + $0x348] sm:$0xff]
        %v499 = vld [vmem:[#allocation8 + $0x350] sm:$0xff]
        %v500 = vld [vmem:[#allocation8 + $0x358] sm:$0xff]
        %v501 = vld [vmem:[#allocation8 + $0x360] sm:$0xff]
        %v502 = vld [vmem:[#allocation8 + $0x368] sm:$0xff]
        %v503 = vld [vmem:[#allocation8 + $0x370] sm:$0xff]
        %v504 = vld [vmem:[#allocation8 + $0x378] sm:$0xff]
        %v505 = vld [vmem:[#allocation8 + $0x380] sm:$0xff]
        %v506 = vld [vmem:[#allocation8 + $0x388] sm:$0xff]
        %v507 = vld [vmem:[#allocation8 + $0x390] sm:$0xff]
        %v508 = vld [vmem:[#allocation8 + $0x398] sm:$0xff]
        %v509 = vld [vmem:[#allocation8 + $0x3a0] sm:$0xff]
        %v510 = vld [vmem:[#allocation8 + $0x3a8] sm:$0xff]
        %v511 = vld [vmem:[#allocation8 + $0x3b0] sm:$0xff]
        %v512 = vld [vmem:[#allocation8 + $0x3b8] sm:$0xff]
        %v513 = vld [vmem:[#allocation8 + $0x3c0] sm:$0xff]
        %v514 = vld [vmem:[#allocation8 + $0x3c8] sm:$0xff]
        %v515 = vld [vmem:[#allocation8 + $0x3d0] sm:$0xff]
        %v516 = vld [vmem:[#allocation8 + $0x3d8] sm:$0xff]
        %v517 = vld [vmem:[#allocation8 + $0x3e0] sm:$0xff]
        %v518 = vld [vmem:[#allocation8 + $0x3e8] sm:$0xff]
        %v519 = vld [vmem:[#allocation8 + $0x3f0] sm:$0xff]
        %v520 = vld [vmem:[#allocation8 + $0x3f8] sm:$0xff]
        %v521 = vld [vmem:[%s4] sm:$0xf]
        %v523 = vlaneseq
        %v524 = vshrl.u32 %v523, 7
        %v525 = vsub.s32 0, %v524
        %v526 = vrot.slane %v521, %v525
        %v527 = vlaneseq
        %v528 = vshrl.u32 %v527, 7
        %v529 = vsub.s32 1, %v528
        %v530 = vrot.slane %v521, %v529
        %v531 = vlaneseq
        %v532 = vshrl.u32 %v531, 7
        %v533 = vsub.s32 2, %v532
        %v534 = vrot.slane %v521, %v533
        %v535 = vlaneseq
        %v536 = vshrl.u32 %v535, 7
        %v537 = vsub.s32 3, %v536
        %v538 = vrot.slane %v521, %v537
        %v545 = vunpack.c.l.s4 1983009808
        %v546 = vunpack.c.0.s8 %v545
        %v547 = vlaneseq
        %v548 = vshrl.u32 %v547, 7
        %v549 = vsub.s32 %v546, %v548
        %v550 = vrot.slane %v392, %v549
        %v551 = vcombine.high %v550, %v550
        %554 = vmatprep.subr.mxu0 %v394
        %555 = vmatpush1.msra.mxu0 %v393
        %556 = vmatprep.subr.mxu0 %v398
        %557 = vmatpush1.msra.mxu0 %v397
        %558 = vmatprep.subr.mxu0 %v402
        %559 = vmatpush1.msra.mxu0 %v401
        %560 = vmatprep.subr.mxu0 %v406
        %561 = vmatpush1.msra.mxu0 %v405
        %562 = vmatprep.subr.mxu0 %v410
        %563 = vmatpush1.msra.mxu0 %v409
        %564 = vmatprep.subr.mxu0 %v414
        %565 = vmatpush1.msra.mxu0 %v413
        %566 = vmatprep.subr.mxu0 %v418
        %567 = vmatpush1.msra.mxu0 %v417
        %568 = vmatprep.subr.mxu0 %v422
        %569 = vmatpush1.msra.mxu0 %v421
        %570 = vmatprep.subr.mxu0 %v426
        %571 = vmatpush1.msra.mxu0 %v425
        %572 = vmatprep.subr.mxu0 %v430
        %573 = vmatpush1.msra.mxu0 %v429
        %574 = vmatprep.subr.mxu0 %v434
        %575 = vmatpush1.msra.mxu0 %v433
        %576 = vmatprep.subr.mxu0 %v438
        %577 = vmatpush1.msra.mxu0 %v437
        %578 = vmatprep.subr.mxu0 %v442
        %579 = vmatpush1.msra.mxu0 %v441
        %580 = vmatprep.subr.mxu0 %v446
        %581 = vmatpush1.msra.mxu0 %v445
        %582 = vmatprep.subr.mxu0 %v450
        %583 = vmatpush1.msra.mxu0 %v449
        %584 = vmatprep.subr.mxu0 %v454
        %585 = vmatpush1.msra.mxu0 %v453
        %586 = vmatprep.subr.mxu0 %v458
        %587 = vmatpush1.msra.mxu0 %v457
        %588 = vmatprep.subr.mxu0 %v462
        %589 = vmatpush1.msra.mxu0 %v461
        %590 = vmatprep.subr.mxu0 %v466
        %591 = vmatpush1.msra.mxu0 %v465
        %592 = vmatprep.subr.mxu0 %v470
        %593 = vmatpush1.msra.mxu0 %v469
        %594 = vmatprep.subr.mxu0 %v474
        %595 = vmatpush1.msra.mxu0 %v473
        %596 = vmatprep.subr.mxu0 %v478
        %597 = vmatpush1.msra.mxu0 %v477
        %598 = vmatprep.subr.mxu0 %v482
        %599 = vmatpush1.msra.mxu0 %v481
        %600 = vmatprep.subr.mxu0 %v486
        %601 = vmatpush1.msra.mxu0 %v485
        %602 = vmatprep.subr.mxu0 %v490
        %603 = vmatpush1.msra.mxu0 %v489
        %604 = vmatprep.subr.mxu0 %v494
        %605 = vmatpush1.msra.mxu0 %v493
        %606 = vmatprep.subr.mxu0 %v498
        %607 = vmatpush1.msra.mxu0 %v497
        %608 = vmatprep.subr.mxu0 %v502
        %609 = vmatpush1.msra.mxu0 %v501
        %610 = vmatprep.subr.mxu0 %v506
        %611 = vmatpush1.msra.mxu0 %v505
        %612 = vmatprep.subr.mxu0 %v510
        %613 = vmatpush1.msra.mxu0 %v509
        %614 = vmatprep.subr.mxu0 %v514
        %615 = vmatpush1.msra.mxu0 %v513
        %616 = vmatprep.subr.mxu0 %v518
        %617 = vmatpush1.msra.mxu0 %v517
        %618 = vmatprep.mubr.f32.mxu0 %v551
        %619 = vmatmul.mubr.f32.gmra.mrb[0].mxu0 %v550
        %v620 = vpop.f32.mrb[0].mxu0
        %v621 = vadd.f32 %v526, %v620
        %v622 = vpop.f32.mrb[0].mxu0
        %v623 = vadd.f32 %v530, %v622
        %624 = vdwg.mxu0
        %625 = vmatprep.subr.mxu0 %v396
        %626 = vmatpush1.msra.mxu0 %v395
        %627 = vmatprep.subr.mxu0 %v400
        %628 = vmatpush1.msra.mxu0 %v399
        %629 = vmatprep.subr.mxu0 %v404
        %630 = vmatpush1.msra.mxu0 %v403
        %631 = vmatprep.subr.mxu0 %v408
        %632 = vmatpush1.msra.mxu0 %v407
        %633 = vmatprep.subr.mxu0 %v412
        %634 = vmatpush1.msra.mxu0 %v411
        %635 = vmatprep.subr.mxu0 %v416
        %636 = vmatpush1.msra.mxu0 %v415
        %637 = vmatprep.subr.mxu0 %v420
        %638 = vmatpush1.msra.mxu0 %v419
        %639 = vmatprep.subr.mxu0 %v424
        %640 = vmatpush1.msra.mxu0 %v423
        %641 = vmatprep.subr.mxu0 %v428
        %642 = vmatpush1.msra.mxu0 %v427
        %643 = vmatprep.subr.mxu0 %v432
        %644 = vmatpush1.msra.mxu0 %v431
        %645 = vmatprep.subr.mxu0 %v436
        %646 = vmatpush1.msra.mxu0 %v435
        %647 = vmatprep.subr.mxu0 %v440
        %648 = vmatpush1.msra.mxu0 %v439
        %649 = vmatprep.subr.mxu0 %v444
        %650 = vmatpush1.msra.mxu0 %v443
        %651 = vmatprep.subr.mxu0 %v448
        %652 = vmatpush1.msra.mxu0 %v447
        %653 = vmatprep.subr.mxu0 %v452
        %654 = vmatpush1.msra.mxu0 %v451
        %655 = vmatprep.subr.mxu0 %v456
        %656 = vmatpush1.msra.mxu0 %v455
        %657 = vmatprep.subr.mxu0 %v460
        %658 = vmatpush1.msra.mxu0 %v459
        %659 = vmatprep.subr.mxu0 %v464
        %660 = vmatpush1.msra.mxu0 %v463
        %661 = vmatprep.subr.mxu0 %v468
        %662 = vmatpush1.msra.mxu0 %v467
        %663 = vmatprep.subr.mxu0 %v472
        %664 = vmatpush1.msra.mxu0 %v471
        %665 = vmatprep.subr.mxu0 %v476
        %666 = vmatpush1.msra.mxu0 %v475
        %667 = vmatprep.subr.mxu0 %v480
        %668 = vmatpush1.msra.mxu0 %v479
        %669 = vmatprep.subr.mxu0 %v484
        %670 = vmatpush1.msra.mxu0 %v483
        %671 = vmatprep.subr.mxu0 %v488
        %672 = vmatpush1.msra.mxu0 %v487
        %673 = vmatprep.subr.mxu0 %v492
        %674 = vmatpush1.msra.mxu0 %v491
        %675 = vmatprep.subr.mxu0 %v496
        %676 = vmatpush1.msra.mxu0 %v495
        %677 = vmatprep.subr.mxu0 %v500
        %678 = vmatpush1.msra.mxu0 %v499
        %679 = vmatprep.subr.mxu0 %v504
        %680 = vmatpush1.msra.mxu0 %v503
        %681 = vmatprep.subr.mxu0 %v508
        %682 = vmatpush1.msra.mxu0 %v507
        %683 = vmatprep.subr.mxu0 %v512
        %684 = vmatpush1.msra.mxu0 %v511
        %685 = vmatprep.subr.mxu0 %v516
        %686 = vmatpush1.msra.mxu0 %v515
        %687 = vmatprep.subr.mxu0 %v520
        %688 = vmatpush1.msra.mxu0 %v519
        %689 = vmatprep.mubr.f32.mxu0 %v551
        %690 = vmatmul.mubr.f32.gmra.mrb[0].mxu0 %v550
        %v691 = vpop.f32.mrb[0].mxu0
        %v692 = vadd.f32 %v534, %v691
        %v693 = vpop.f32.mrb[0].mxu0
        %v694 = vadd.f32 %v538, %v693
        %695 = vdwg.mxu0
        %v696 = vxor.u32 %v621, 2147483648
        %v697 = vmul.f32 %v696, 1.442695
        %v698 = vpow.pop %v697
        %v699 = vadd.f32 %v698, 1.0
        %v700 = vrcp.pop %v699
        %v701 = vmul.f32 1.0, %v700
        %v702 = vxor.u32 %v623, 2147483648
        %v703 = vmul.f32 %v702, 1.442695
        %v704 = vpow.pop %v703
        %v705 = vadd.f32 %v704, 1.0
        %v706 = vrcp.pop %v705
        %v707 = vmul.f32 1.0, %v706
        %v708 = vtanh.pop %v692
        %v709 = vxor.u32 %v694, 2147483648
        %v710 = vmul.f32 %v709, 1.442695
        %v711 = vpow.pop %v710
        %v712 = vadd.f32 %v711, 1.0
        %v713 = vrcp.pop %v712
        %v714 = vmul.f32 1.0, %v713
        %v715 = vmul.f32 %v707, %v388
        %v716 = vmul.f32 %v701, %v708
        %v717 = vadd.f32 %v715, %v716
        %v718 = vtanh.pop %v717
        %v719 = vmul.f32 %v714, %v718
        %720 = vst [vmem:[#allocation12] sm:$0x3] %v719
        %721 = vst [vmem:[#allocation14] sm:$0x3] %v717
        %v722 = vld [vmem:[#allocation9] sm:$0xff]
        %v723 = vld [vmem:[#allocation9 + $0x8] sm:$0xff]
        %v724 = vld [vmem:[#allocation9 + $0x10] sm:$0xff]
        %v725 = vld [vmem:[#allocation9 + $0x18] sm:$0xff]
        %v726 = vld [vmem:[#allocation9 + $0x20] sm:$0xff]
        %v727 = vld [vmem:[#allocation9 + $0x28] sm:$0xff]
        %v728 = vld [vmem:[#allocation9 + $0x30] sm:$0xff]
        %v729 = vld [vmem:[#allocation9 + $0x38] sm:$0xff]
        %v730 = vld [vmem:[#allocation9 + $0x40] sm:$0xff]
        %v731 = vld [vmem:[#allocation9 + $0x48] sm:$0xff]
        %v732 = vld [vmem:[#allocation9 + $0x50] sm:$0xff]
        %v733 = vld [vmem:[#allocation9 + $0x58] sm:$0xff]
        %v734 = vld [vmem:[#allocation9 + $0x60] sm:$0xff]
        %v735 = vld [vmem:[#allocation9 + $0x68] sm:$0xff]
        %v736 = vld [vmem:[#allocation9 + $0x70] sm:$0xff]
        %v737 = vld [vmem:[#allocation9 + $0x78] sm:$0xff]
        %v738 = vld [vmem:[#allocation9 + $0x80] sm:$0xff]
        %v739 = vld [vmem:[#allocation9 + $0x88] sm:$0xff]
        %v740 = vld [vmem:[#allocation9 + $0x90] sm:$0xff]
        %v741 = vld [vmem:[#allocation9 + $0x98] sm:$0xff]
        %v742 = vld [vmem:[#allocation9 + $0xa0] sm:$0xff]
        %v743 = vld [vmem:[#allocation9 + $0xa8] sm:$0xff]
        %v744 = vld [vmem:[#allocation9 + $0xb0] sm:$0xff]
        %v745 = vld [vmem:[#allocation9 + $0xb8] sm:$0xff]
        %v746 = vld [vmem:[#allocation9 + $0xc0] sm:$0xff]
        %v747 = vld [vmem:[#allocation9 + $0xc8] sm:$0xff]
        %v748 = vld [vmem:[#allocation9 + $0xd0] sm:$0xff]
        %v749 = vld [vmem:[#allocation9 + $0xd8] sm:$0xff]
        %v750 = vld [vmem:[#allocation9 + $0xe0] sm:$0xff]
        %v751 = vld [vmem:[#allocation9 + $0xe8] sm:$0xff]
        %v752 = vld [vmem:[#allocation9 + $0xf0] sm:$0xff]
        %v753 = vld [vmem:[#allocation9 + $0xf8] sm:$0xff]
        %v754 = vld [vmem:[#allocation9 + $0x100] sm:$0xff]
        %v755 = vld [vmem:[#allocation9 + $0x108] sm:$0xff]
        %v756 = vld [vmem:[#allocation9 + $0x110] sm:$0xff]
        %v757 = vld [vmem:[#allocation9 + $0x118] sm:$0xff]
        %v758 = vld [vmem:[#allocation9 + $0x120] sm:$0xff]
        %v759 = vld [vmem:[#allocation9 + $0x128] sm:$0xff]
        %v760 = vld [vmem:[#allocation9 + $0x130] sm:$0xff]
        %v761 = vld [vmem:[#allocation9 + $0x138] sm:$0xff]
        %v762 = vld [vmem:[#allocation9 + $0x140] sm:$0xff]
        %v763 = vld [vmem:[#allocation9 + $0x148] sm:$0xff]
        %v764 = vld [vmem:[#allocation9 + $0x150] sm:$0xff]
        %v765 = vld [vmem:[#allocation9 + $0x158] sm:$0xff]
        %v766 = vld [vmem:[#allocation9 + $0x160] sm:$0xff]
        %v767 = vld [vmem:[#allocation9 + $0x168] sm:$0xff]
        %v768 = vld [vmem:[#allocation9 + $0x170] sm:$0xff]
        %v769 = vld [vmem:[#allocation9 + $0x178] sm:$0xff]
        %v770 = vld [vmem:[#allocation9 + $0x180] sm:$0xff]
        %v771 = vld [vmem:[#allocation9 + $0x188] sm:$0xff]
        %v772 = vld [vmem:[#allocation9 + $0x190] sm:$0xff]
        %v773 = vld [vmem:[#allocation9 + $0x198] sm:$0xff]
        %v774 = vld [vmem:[#allocation9 + $0x1a0] sm:$0xff]
        %v775 = vld [vmem:[#allocation9 + $0x1a8] sm:$0xff]
        %v776 = vld [vmem:[#allocation9 + $0x1b0] sm:$0xff]
        %v777 = vld [vmem:[#allocation9 + $0x1b8] sm:$0xff]
        %v778 = vld [vmem:[#allocation9 + $0x1c0] sm:$0xff]
        %v779 = vld [vmem:[#allocation9 + $0x1c8] sm:$0xff]
        %v780 = vld [vmem:[#allocation9 + $0x1d0] sm:$0xff]
        %v781 = vld [vmem:[#allocation9 + $0x1d8] sm:$0xff]
        %v782 = vld [vmem:[#allocation9 + $0x1e0] sm:$0xff]
        %v783 = vld [vmem:[#allocation9 + $0x1e8] sm:$0xff]
        %v784 = vld [vmem:[#allocation9 + $0x1f0] sm:$0xff]
        %v785 = vld [vmem:[#allocation9 + $0x1f8] sm:$0xff]
        %v786 = vld [vmem:[%s6] sm:$0xf]
        %v788 = vlaneseq
        %v789 = vshrl.u32 %v788, 7
        %v790 = vsub.s32 0, %v789
        %v791 = vrot.slane %v786, %v790
        %v792 = vlaneseq
        %v793 = vshrl.u32 %v792, 7
        %v794 = vsub.s32 1, %v793
        %v795 = vrot.slane %v786, %v794
        %v796 = vlaneseq
        %v797 = vshrl.u32 %v796, 7
        %v798 = vsub.s32 2, %v797
        %v799 = vrot.slane %v786, %v798
        %v800 = vlaneseq
        %v801 = vshrl.u32 %v800, 7
        %v802 = vsub.s32 3, %v801
        %v803 = vrot.slane %v786, %v802
        %808 = vmatprep.subr.mxu0 %v723
        %809 = vmatpush1.msra.mxu0 %v722
        %810 = vmatprep.subr.mxu0 %v727
        %811 = vmatpush1.msra.mxu0 %v726
        %812 = vmatprep.subr.mxu0 %v731
        %813 = vmatpush1.msra.mxu0 %v730
        %814 = vmatprep.subr.mxu0 %v735
        %815 = vmatpush1.msra.mxu0 %v734
        %816 = vmatprep.subr.mxu0 %v739
        %817 = vmatpush1.msra.mxu0 %v738
        %818 = vmatprep.subr.mxu0 %v743
        %819 = vmatpush1.msra.mxu0 %v742
        %820 = vmatprep.subr.mxu0 %v747
        %821 = vmatpush1.msra.mxu0 %v746
        %822 = vmatprep.subr.mxu0 %v751
        %823 = vmatpush1.msra.mxu0 %v750
        %824 = vmatprep.subr.mxu0 %v755
        %825 = vmatpush1.msra.mxu0 %v754
        %826 = vmatprep.subr.mxu0 %v759
        %827 = vmatpush1.msra.mxu0 %v758
        %828 = vmatprep.subr.mxu0 %v763
        %829 = vmatpush1.msra.mxu0 %v762
        %830 = vmatprep.subr.mxu0 %v767
        %831 = vmatpush1.msra.mxu0 %v766
        %832 = vmatprep.subr.mxu0 %v771
        %833 = vmatpush1.msra.mxu0 %v770
        %834 = vmatprep.subr.mxu0 %v775
        %835 = vmatpush1.msra.mxu0 %v774
        %836 = vmatprep.subr.mxu0 %v779
        %837 = vmatpush1.msra.mxu0 %v778
        %838 = vmatprep.subr.mxu0 %v783
        %839 = vmatpush1.msra.mxu0 %v782
        %840 = vmatprep.subr.mxu0 0.0
        %841 = vmatpush1.msra.mxu0 0.0
        %842 = vmatprep.subr.mxu0 0.0
        %843 = vmatpush1.msra.mxu0 0.0
        %844 = vmatprep.subr.mxu0 0.0
        %845 = vmatpush1.msra.mxu0 0.0
        %846 = vmatprep.subr.mxu0 0.0
        %847 = vmatpush1.msra.mxu0 0.0
        %848 = vmatprep.subr.mxu0 0.0
        %849 = vmatpush1.msra.mxu0 0.0
        %850 = vmatprep.subr.mxu0 0.0
        %851 = vmatpush1.msra.mxu0 0.0
        %852 = vmatprep.subr.mxu0 0.0
        %853 = vmatpush1.msra.mxu0 0.0
        %854 = vmatprep.subr.mxu0 0.0
        %855 = vmatpush1.msra.mxu0 0.0
        %856 = vmatprep.subr.mxu0 0.0
        %857 = vmatpush1.msra.mxu0 0.0
        %858 = vmatprep.subr.mxu0 0.0
        %859 = vmatpush1.msra.mxu0 0.0
        %860 = vmatprep.subr.mxu0 0.0
        %861 = vmatpush1.msra.mxu0 0.0
        %862 = vmatprep.subr.mxu0 0.0
        %863 = vmatpush1.msra.mxu0 0.0
        %864 = vmatprep.subr.mxu0 0.0
        %865 = vmatpush1.msra.mxu0 0.0
        %866 = vmatprep.subr.mxu0 0.0
        %867 = vmatpush1.msra.mxu0 0.0
        %868 = vmatprep.subr.mxu0 0.0
        %869 = vmatpush1.msra.mxu0 0.0
        %870 = vmatprep.subr.mxu0 0.0
        %871 = vmatpush1.msra.mxu0 0.0
        %872 = vmatprep.mubr.f32.mxu0 0.0
        %873 = vmatmul.mubr.f32.gmra.mrb[0].mxu0 %v719
        %v874 = vpop.f32.mrb[0].mxu0
        %v875 = vadd.f32 %v791, %v874
        %v876 = vpop.f32.mrb[0].mxu0
        %v877 = vadd.f32 %v795, %v876
        %878 = vdwg.mxu0
        %879 = vmatprep.subr.mxu0 %v725
        %880 = vmatpush1.msra.mxu0 %v724
        %881 = vmatprep.subr.mxu0 %v729
        %882 = vmatpush1.msra.mxu0 %v728
        %883 = vmatprep.subr.mxu0 %v733
        %884 = vmatpush1.msra.mxu0 %v732
        %885 = vmatprep.subr.mxu0 %v737
        %886 = vmatpush1.msra.mxu0 %v736
        %887 = vmatprep.subr.mxu0 %v741
        %888 = vmatpush1.msra.mxu0 %v740
        %889 = vmatprep.subr.mxu0 %v745
        %890 = vmatpush1.msra.mxu0 %v744
        %891 = vmatprep.subr.mxu0 %v749
        %892 = vmatpush1.msra.mxu0 %v748
        %893 = vmatprep.subr.mxu0 %v753
        %894 = vmatpush1.msra.mxu0 %v752
        %895 = vmatprep.subr.mxu0 %v757
        %896 = vmatpush1.msra.mxu0 %v756
        %897 = vmatprep.subr.mxu0 %v761
        %898 = vmatpush1.msra.mxu0 %v760
        %899 = vmatprep.subr.mxu0 %v765
        %900 = vmatpush1.msra.mxu0 %v764
        %901 = vmatprep.subr.mxu0 %v769
        %902 = vmatpush1.msra.mxu0 %v768
        %903 = vmatprep.subr.mxu0 %v773
        %904 = vmatpush1.msra.mxu0 %v772
        %905 = vmatprep.subr.mxu0 %v777
        %906 = vmatpush1.msra.mxu0 %v776
        %907 = vmatprep.subr.mxu0 %v781
        %908 = vmatpush1.msra.mxu0 %v780
        %909 = vmatprep.subr.mxu0 %v785
        %910 = vmatpush1.msra.mxu0 %v784
        %911 = vmatprep.subr.mxu0 0.0
        %912 = vmatpush1.msra.mxu0 0.0
        %913 = vmatprep.subr.mxu0 0.0
        %914 = vmatpush1.msra.mxu0 0.0
        %915 = vmatprep.subr.mxu0 0.0
        %916 = vmatpush1.msra.mxu0 0.0
        %917 = vmatprep.subr.mxu0 0.0
        %918 = vmatpush1.msra.mxu0 0.0
        %919 = vmatprep.subr.mxu0 0.0
        %920 = vmatpush1.msra.mxu0 0.0
        %921 = vmatprep.subr.mxu0 0.0
        %922 = vmatpush1.msra.mxu0 0.0
        %923 = vmatprep.subr.mxu0 0.0
        %924 = vmatpush1.msra.mxu0 0.0
        %925 = vmatprep.subr.mxu0 0.0
        %926 = vmatpush1.msra.mxu0 0.0
        %927 = vmatprep.subr.mxu0 0.0
        %928 = vmatpush1.msra.mxu0 0.0
        %929 = vmatprep.subr.mxu0 0.0
        %930 = vmatpush1.msra.mxu0 0.0
        %931 = vmatprep.subr.mxu0 0.0
        %932 = vmatpush1.msra.mxu0 0.0
        %933 = vmatprep.subr.mxu0 0.0
        %934 = vmatpush1.msra.mxu0 0.0
        %935 = vmatprep.subr.mxu0 0.0
        %936 = vmatpush1.msra.mxu0 0.0
        %937 = vmatprep.subr.mxu0 0.0
        %938 = vmatpush1.msra.mxu0 0.0
        %939 = vmatprep.subr.mxu0 0.0
        %940 = vmatpush1.msra.mxu0 0.0
        %941 = vmatprep.subr.mxu0 0.0
        %942 = vmatpush1.msra.mxu0 0.0
        %943 = vmatprep.mubr.f32.mxu0 0.0
        %944 = vmatmul.mubr.f32.gmra.mrb[0].mxu0 %v719
        %v945 = vpop.f32.mrb[0].mxu0
        %v946 = vadd.f32 %v799, %v945
        %v947 = vpop.f32.mrb[0].mxu0
        %v948 = vadd.f32 %v803, %v947
        %949 = vdwg.mxu0
        %950 = vst [vmem:[%s370] sm:$0x3] %v875
        %v951 = vmul.f32 %v877, 1.442695
        %v952 = vpow.pop %v951
        %953 = vst [vmem:[%s370 + $0x2] sm:$0x3] %v952
        %vm954 = vcmask 1041408
        %v955 = vsel %vm954, %v946, -inf
        %956 = vmax.xlane.f32.xlu0 %v955
        %v957 = vpop.xlane.xlu0 %956
        %v958 = vsub.f32 %v946, %v957
        %v959 = vmul.f32 %v958, 1.442695
        %v960 = vpow.pop %v959
        %v961 = vsel %vm954, %v960, 0.0
        %962 = vadd.xlane.f32.xlu0 %v961
        %v963 = vpop.xlane.xlu0 %962
        %v964 = vlog2.pop %v963
        %v965 = vmul.f32 %v964, 0.6931472
        %v966 = vsub.f32 %v958, %v965
        %967 = vst [vmem:[%s370 + $0x4] sm:$0x3] %v966
        %968 = vst [vmem:[%s370 + $0x6] sm:$0x3] %v948
        %s969 = sand.u32 %s188, 1
        %s970 = scalar_lea.sflag [#allocation5], %s969
        %s971 = sand.u32 %s188, 1
        %s972 = smul.addr %s971, 8
        %s973 = scalar_lea.vmem [#allocation11], %s972
        // Predicated region
        $region69: #{tpu_custom_call.1} parent=47 // pred_check
          %p974 = pneg %p198
        $region70: #{tpu_custom_call.1} parent=47 // pred_check_branch
          %976 = sbr.rel (%p974) target = $region72
        $region71: #{tpu_custom_call.1} parent=47 // pred_region
          %s978 = ssub.s32 128, 128
          %979 = vsyncadd %s970, %s978
          %s980 = smul.addr %s28, 4
          %s981 = smul.addr %s980, 32
          %s982 = scalar_lea.hbm %s7, %s981
          %s984 = sshll.u32 %s973, 4
          %s985 = int_to_ptr.vmem [resolvable:$true] %s984
          %987 = dma.vmem_to_hbm [thread:$0]  %s985, 128, %s982, %s970
        $region72: #{tpu_custom_call.1} parent=47 // pred_fallthru
          _
        // Predicated region
        $region73: #{tpu_custom_call.1} parent=47 // pred_check
          %p988 = pneg %p219
        $region74: #{tpu_custom_call.1} parent=47 // pred_check_branch
          %990 = sbr.rel (%p988) target = $region76
        $region75: #{tpu_custom_call.1} parent=47 // pred_region
          %s992 = ssub.s32 32, 32
          %993 = vsyncadd [#allocation13], %s992
          %s995 = sshll.u32 [#allocation12], 4
          %s996 = int_to_ptr.vmem [resolvable:$true] %s995
          %998 = dma.vmem_to_hbm [thread:$0]  %s996, 32, %s8, [#allocation13]
        $region76: #{tpu_custom_call.1} parent=47 // pred_fallthru
          _
        // Predicated region
        $region77: #{tpu_custom_call.1} parent=47 // pred_check
          %p999 = pneg %p240
        $region78: #{tpu_custom_call.1} parent=47 // pred_check_branch
          %1001 = sbr.rel (%p999) target = $region80
        $region79: #{tpu_custom_call.1} parent=47 // pred_region
          %s1003 = ssub.s32 32, 32
          %1004 = vsyncadd [#allocation13], %s1003
          %s1006 = sshll.u32 [#allocation14], 4
          %s1007 = int_to_ptr.vmem [resolvable:$true] %s1006
          %1009 = dma.vmem_to_hbm [thread:$0]  %s1007, 32, %s9, [#allocation13]
        $region80: #{tpu_custom_call.1} parent=47 // pred_fallthru
          _
        // Predicated region
        $region81: #{tpu_custom_call.1} parent=47 // pred_check
          %p1010 = pneg %p219
        $region82: #{tpu_custom_call.1} parent=47 // pred_check_branch
          %1012 = sbr.rel (%p1010) target = $region84
        $region83: #{tpu_custom_call.1} parent=47 // pred_region
          %1013 = dma.done [#allocation13], 32
        $region84: #{tpu_custom_call.1} parent=47 // pred_fallthru
          _
        // Predicated region
        $region85: #{tpu_custom_call.1} parent=47 // pred_check
          %p1014 = pneg %p240
        $region86: #{tpu_custom_call.1} parent=47 // pred_check_branch
          %1016 = sbr.rel (%p1014) target = $region88
        $region87: #{tpu_custom_call.1} parent=47 // pred_region
          %1017 = dma.done [#allocation13], 32
        $region88: #{tpu_custom_call.1} parent=47 // pred_fallthru
          _
      $region48: #{tpu_custom_call.1} parent=5 // pred_fallthru
        _
      %p1018 = scmp.le.s32.totalorder 2, %s23
      // Predicated region
      $region89: #{tpu_custom_call.1} parent=5 // pred_check
        %p1019 = pneg %p1018
      $region90: #{tpu_custom_call.1} parent=5 // pred_check_branch
        %1021 = sbr.rel (%p1019) target = $region92
      $region91: #{tpu_custom_call.1} parent=5 // pred_region
        %s1022 = ssub.s32 %s23, 2
        // Predicated region
        $region93: #{tpu_custom_call.1} parent=91 // pred_check
          %p1023 = pneg %p204
        $region94: #{tpu_custom_call.1} parent=91 // pred_check_branch
          %1025 = sbr.rel (%p1023) target = $region96
        $region95: #{tpu_custom_call.1} parent=91 // pred_region
          %s1026 = sand.u32 %s189, 1
          %s1027 = scalar_lea.sflag [#allocation5], %s1026
          %s1028 = sand.u32 %s189, 1
          %s1029 = smul.addr %s1028, 8
          %s1030 = scalar_lea.vmem [#allocation11], %s1029
          %1031 = dma.done %s1027, 128
        $region96: #{tpu_custom_call.1} parent=91 // pred_fallthru
          _
      $region92: #{tpu_custom_call.1} parent=5 // pred_fallthru
        _
    $region6: #{tpu_custom_call.1} parent=1 // loop_footer
      %s27 = sadd.s32 1, %s23
    $region7: #{tpu_custom_call.1} parent=1 // loop_footer_branch
      %22 = sbr.rel target = $region3
    $region8: #{tpu_custom_call.1} parent=1 // loop_exit
      _
    %1032 = vsyncpa [#allocation4], 1
    %s1033 = scalar_lea.sflag [#allocation4], 1
    %1034 = vsyncpa %s1033, 1
    %1035 = vsyncpa [#allocation7], 1
    %1036 = vsyncpa [#allocation10], 1
    %1037 = vsyncpa [#allocation5], 1
    %s1038 = scalar_lea.sflag [#allocation5], 1
    %1039 = vsyncpa %s1038, 1
    %1040 = vsyncpa [#allocation13], 1

</llo_original>
